<compile_context>
chip_gen: v5e
topology: v5e:2x2
jax: 0.10.0
libtpu: 0.0.40
codegen_flags: <defaults>
</compile_context>

<pallas_src>
import functools
import math

import jax
import jax.numpy as jnp
from jax.experimental import pallas as pl
from jax.experimental.pallas import tpu as pltpu

# ---------------- small, deterministic config ----------------
BATCH = 2
SEQ = 16
HIDDEN = 128          # stand-in for 768
NUM_HEADS = 2
HEAD_DIM = HIDDEN // NUM_HEADS
HEAD_PAD = 128        # heads padded to a full 128-lane group (alignment; zeros are exact)
INTERMEDIATE = 256
NUM_LAYERS = 2
VOCAB = 100
TYPE_VOCAB = 2
MAX_POS = 64
N_POS_TAGS = 8
LN_EPS = 1e-12


# ---------------- shared in-kernel helpers ----------------
def _layernorm(x, gamma, beta, eps):
    mu = jnp.mean(x, axis=-1, keepdims=True)
    var = jnp.mean(jnp.square(x - mu), axis=-1, keepdims=True)
    return (x - mu) * jax.lax.rsqrt(var + eps) * gamma + beta


def _gelu_tanh(x):
    # TODO(synk): HF BERT default act is exact erf-GELU; tanh approximation is used because
    # lax.erf lowering under Mosaic is not guaranteed.
    return 0.5 * x * (1.0 + jnp.tanh(0.7978845608028654 * (x + 0.044715 * x * x * x)))


# ---------------- fused all-layers encoder kernel ----------------
def _bert_encoder_kernel(x_ref, mask_ref, embg_ref, embb_ref,
                         wqkv_ref, bqkv_ref, wo_ref, bo_ref,
                         ln1g_ref, ln1b_ref, wi_ref, bi_ref, wf_ref, bf_ref,
                         ln2g_ref, ln2b_ref, o_ref,
                         *, num_heads, head_pad, eps):
    l = pl.program_id(0)

    # ---- layer 0 prologue: embedding LayerNorm (folds the former standalone LN call) ----
    @pl.when(l == 0)
    def _():
        o_ref[...] = _layernorm(x_ref[...], embg_ref[...], embb_ref[...], eps)

    x = o_ref[...]                                   # resident activation, [B*S, H] f32
    mask = mask_ref[...]                             # [B*S, B*S] additive (block-diag + padding)

    # ---- fused, head-padded QKV projection (scale already folded into Wq/bq) ----
    qkv = jnp.dot(x.astype(jnp.bfloat16), wqkv_ref[...],
                  preferred_element_type=jnp.float32) + bqkv_ref[...]       # [BS, 3*nh*HP]
    qkv_b = qkv.astype(jnp.bfloat16)                 # single cast; sliced per head below

    q_off = 0
    k_off = num_heads * head_pad
    v_off = 2 * num_heads * head_pad

    # ---- per-head attention; all slices are 128-lane aligned ----
    ctx_parts = []
    for h in range(num_heads):                       # static, tiny unrolled loop
        qh = qkv_b[:, q_off + h * head_pad: q_off + (h + 1) * head_pad]
        kh = qkv_b[:, k_off + h * head_pad: k_off + (h + 1) * head_pad]
        vh = qkv_b[:, v_off + h * head_pad: v_off + (h + 1) * head_pad]
        s = jax.lax.dot_general(qh, kh, (((1,), (1,)), ((), ())),
                                preferred_element_type=jnp.float32) + mask  # [BS, BS]
        s = s - jnp.max(s, axis=-1, keepdims=True)
        p = jnp.exp(s)
        p = p / jnp.sum(p, axis=-1, keepdims=True)   # exact division (reference parity)
        ctx_parts.append(jnp.dot(p.astype(jnp.bfloat16), vh,
                                 preferred_element_type=jnp.float32))       # [BS, HP]
    ctx = jnp.concatenate(ctx_parts, axis=1).astype(jnp.bfloat16)           # [BS, nh*HP]

    # ---- one full-K output projection + residual + LayerNorm ----
    attn = jnp.dot(ctx, wo_ref[...], preferred_element_type=jnp.float32) + bo_ref[...] + x
    h1 = _layernorm(attn, ln1g_ref[...], ln1b_ref[...], eps)

    # ---- FFN (wi -> GELU -> wf) + residual + LayerNorm ----
    inter = jnp.dot(h1.astype(jnp.bfloat16), wi_ref[...],
                    preferred_element_type=jnp.float32) + bi_ref[...]
    inter = _gelu_tanh(inter)
    ffo = jnp.dot(inter.astype(jnp.bfloat16), wf_ref[...],
                  preferred_element_type=jnp.float32) + bf_ref[...]
    o_ref[...] = _layernorm(ffo + h1, ln2g_ref[...], ln2b_ref[...], eps)


def bert_encoder(x_emb, mask_full, emb_ln_g, emb_ln_b, enc):
    """All BERT encoder layers (plus the embedding LN) as one pallas_call.

    x_emb: [B*S, H] f32 (embedding sum, pre-LN); mask_full: [B*S, B*S] additive.
    enc: dict of per-layer weights stacked along a leading L dim.
    Returns [B*S, H] f32 final hidden states.
    """
    BS, H = x_emb.shape
    L = enc["wqkv"].shape[0]
    nh_hp = NUM_HEADS * HEAD_PAD
    I = enc["wi"].shape[-1]

    def wspec(*dims):      # stacked per-layer weight: leading L dim squeezed, index by layer
        return pl.BlockSpec((None,) + dims, lambda l: (l, 0, 0))

    def rep(*dims):        # layer-invariant block (loaded once, constant index)
        return pl.BlockSpec(dims, lambda l: (0, 0))

    kernel = functools.partial(_bert_encoder_kernel, num_heads=NUM_HEADS,
                               head_pad=HEAD_PAD, eps=LN_EPS)

    return pl.pallas_call(
        kernel,
        out_shape=jax.ShapeDtypeStruct((BS, H), jnp.float32),
        grid=(L,),
        in_specs=[
            rep(BS, H),                          # embedding sum (pre-LN)
            rep(BS, BS),                         # additive attention mask
            rep(1, H), rep(1, H),                # embedding LN gamma / beta
            wspec(H, 3 * nh_hp), wspec(1, 3 * nh_hp),   # fused QKV weight / bias (head-padded)
            wspec(nh_hp, H), wspec(1, H),        # output projection (row-padded) / bias
            wspec(1, H), wspec(1, H),            # LN1 gamma / beta
            wspec(H, I), wspec(1, I),            # FFN in
            wspec(I, H), wspec(1, H),            # FFN out
            wspec(1, H), wspec(1, H),            # LN2 gamma / beta
        ],
        # Constant output block index across the layer axis => activation stays resident in
        # VMEM for all layers; written back to HBM once at the end of the grid.
        out_specs=pl.BlockSpec((BS, H), lambda l: (0, 0)),
        compiler_params=pltpu.CompilerParams(dimension_semantics=("arbitrary",)),
    )(x_emb, mask_full, emb_ln_g, emb_ln_b,
      enc["wqkv"], enc["bqkv"], enc["wo"], enc["bo"],
      enc["ln1_g"], enc["ln1_b"], enc["wi"], enc["bi"],
      enc["wf"], enc["bf"], enc["ln2_g"], enc["ln2_b"])


# ---------------- model glue (plain JAX around the fused kernel) ----------------
def bert_forward(params, input_ids, token_type_ids, attention_mask, pos_tag_id):
    B, S = input_ids.shape
    emb = (params["word_emb"][input_ids]
           + params["tok_type_emb"][token_type_ids]
           + params["pos_emb"][jnp.arange(S)][None, :, :]
           + params["pos_tag_emb"][pos_tag_id])
    x = emb.reshape(B * S, HIDDEN).astype(jnp.float32)
    # dropout is identity (eval mode)

    # Additive mask on the merged [B*S] key axis: BERT padding mask on keys, plus -10000 on
    # cross-batch entries so the batch-merged slab never attends across batch boundaries
    # (exp(-10000 - max) underflows to exactly 0 in f32).
    km = ((1.0 - attention_mask.astype(jnp.float32)) * -10000.0).reshape(B * S)
    bidx = jnp.arange(B * S) // S
    same_batch = bidx[:, None] == bidx[None, :]
    mask_full = jnp.where(same_batch, km[None, :], -10000.0)                # [B*S, B*S]

    h = bert_encoder(x, mask_full, params["emb_ln_g"], params["emb_ln_b"], params["enc"])
    return h.reshape(B, S, HIDDEN)


def distant_cross_entropy(logits, positions):
    """Matches the reference distant_cross_entropy (no mask).  Plain JAX: a [B, S]
    reduction behind a pallas_call is pure launch/DMA overhead."""
    logp = jax.nn.log_softmax(logits.astype(jnp.float32), axis=-1)
    pos = positions.astype(jnp.float32)
    return -jnp.mean(jnp.sum(pos * logp, axis=-1) / jnp.sum(pos, axis=-1))


@functools.partial(jax.jit, static_argnames=("mode",))
def mrc_forward(params, input_ids, token_type_ids, attention_mask,
                start_pos, end_pos, polarity_label, pos_tag_id, mode="aspect"):
    B, S = input_ids.shape
    seq_out = bert_forward(params, input_ids, token_type_ids, attention_mask, pos_tag_id)
    x2 = seq_out.reshape(B * S, HIDDEN)

    # polarity head on [CLS] — N=3 lane-sparse output -> plain JAX
    pol_emb = seq_out[:, 0, :]                                              # [B, H]
    pol_logits = pol_emb @ params["polarity"]["w"] + params["polarity"]["b"]  # [B, 3]
    logp = jax.nn.log_softmax(pol_logits, axis=-1)
    polarity_loss = -jnp.mean(jnp.take_along_axis(logp, polarity_label[:, None], axis=-1))

    if mode == "opinion":
        h0, h1 = "start", "end"
    elif mode == "opinion_map_aspect":
        h0, h1 = "om_start", "om_end"
    else:  # aspect
        h0, h1 = "a_start", "a_end"
    # span heads fused into one [H, 2] matmul — N=1 lane-sparse outputs -> plain JAX
    head_w = jnp.concatenate([params[h0]["w"], params[h1]["w"]], axis=1)    # [H, 2]
    head_b = jnp.concatenate([params[h0]["b"], params[h1]["b"]])            # [2]
    se = x2 @ head_w + head_b                                               # [B*S, 2]
    start_logits = se[:, 0].reshape(B, S)
    end_logits = se[:, 1].reshape(B, S)

    start_loss = distant_cross_entropy(start_logits, start_pos)
    end_loss = distant_cross_entropy(end_logits, end_pos)
    total_loss = (start_loss + end_loss) / 2.0

    return (start_logits, end_logits, total_loss,
            jax.nn.softmax(pol_logits, axis=-1), polarity_loss)


# ---------------- parameter packing (layout/alignment prep, done once) ----------------
def pack_encoder_params(layers):
    """Stack per-layer weights along L, pad each head to HEAD_PAD lanes (zeros are exact),
    fold 1/sqrt(head_dim) into Wq/bq, and cast MXU-facing weights to bf16."""
    nh, d, hp = NUM_HEADS, HEAD_DIM, HEAD_PAD
    scale = 1.0 / math.sqrt(d)

    def pad_cols(w):   # [H, nh*d] -> [H, nh*hp]
        return jnp.pad(w.reshape(HIDDEN, nh, d),
                       ((0, 0), (0, 0), (0, hp - d))).reshape(HIDDEN, nh * hp)

    def pad_bias(b):   # [nh*d] -> [1, nh*hp]
        return jnp.pad(b.reshape(nh, d), ((0, 0), (0, hp - d))).reshape(1, nh * hp)

    def pad_rows(w):   # [nh*d, H] -> [nh*hp, H]
        return jnp.pad(w.reshape(nh, d, HIDDEN),
                       ((0, 0), (0, hp - d), (0, 0))).reshape(nh * hp, HIDDEN)

    wdt = jnp.bfloat16   # MXU-facing weights stored bf16 (accumulation stays f32 in-kernel)
    enc = {
        "wqkv": jnp.stack([jnp.concatenate(
            [pad_cols(lp["wq"] * scale), pad_cols(lp["wk"]), pad_cols(lp["wv"])],
            axis=1) for lp in layers]).astype(wdt),
        "bqkv": jnp.stack([jnp.concatenate(
            [pad_bias(lp["bq"] * scale), pad_bias(lp["bk"]), pad_bias(lp["bv"])],
            axis=1) for lp in layers]).astype(jnp.float32),
        "wo": jnp.stack([pad_rows(lp["wo"]) for lp in layers]).astype(wdt),
        "bo": jnp.stack([lp["bo"].reshape(1, HIDDEN) for lp in layers]),
        "ln1_g": jnp.stack([lp["ln1_g"].reshape(1, HIDDEN) for lp in layers]),
        "ln1_b": jnp.stack([lp["ln1_b"].reshape(1, HIDDEN) for lp in layers]),
        "wi": jnp.stack([lp["wi"] for lp in layers]).astype(wdt),
        "bi": jnp.stack([lp["bi"].reshape(1, INTERMEDIATE) for lp in layers]),
        "wf": jnp.stack([lp["wf"] for lp in layers]).astype(wdt),
        "bf": jnp.stack([lp["bf"].reshape(1, HIDDEN) for lp in layers]),
        "ln2_g": jnp.stack([lp["ln2_g"].reshape(1, HIDDEN) for lp in layers]),
        "ln2_b": jnp.stack([lp["ln2_b"].reshape(1, HIDDEN) for lp in layers]),
    }
    return enc


def init_params(key):
    keys = iter(jax.random.split(key, 512))

    def nrm(shape):
        return 0.02 * jax.random.normal(next(keys), shape, jnp.float32)

    word_emb = nrm((VOCAB, HIDDEN)).at[0].set(0.0)  # padding_idx = 0
    layers = []
    for _ in range(NUM_LAYERS):
        layers.append({
            "wq": nrm((HIDDEN, HIDDEN)), "bq": jnp.zeros((HIDDEN,), jnp.float32),
            "wk": nrm((HIDDEN, HIDDEN)), "bk": jnp.zeros((HIDDEN,), jnp.float32),
            "wv": nrm((HIDDEN, HIDDEN)), "bv": jnp.zeros((HIDDEN,), jnp.float32),
            "wo": nrm((HIDDEN, HIDDEN)), "bo": jnp.zeros((HIDDEN,), jnp.float32),
            "ln1_g": jnp.ones((HIDDEN,), jnp.float32),
            "ln1_b": jnp.zeros((HIDDEN,), jnp.float32),
            "wi": nrm((HIDDEN, INTERMEDIATE)), "bi": jnp.zeros((INTERMEDIATE,), jnp.float32),
            "wf": nrm((INTERMEDIATE, HIDDEN)), "bf": jnp.zeros((HIDDEN,), jnp.float32),
            "ln2_g": jnp.ones((HIDDEN,), jnp.float32),
            "ln2_b": jnp.zeros((HIDDEN,), jnp.float32),
        })
    params = {
        "word_emb": word_emb,
        "pos_emb": nrm((MAX_POS, HIDDEN)),
        "tok_type_emb": nrm((TYPE_VOCAB, HIDDEN)),
        "pos_tag_emb": nrm((N_POS_TAGS, HIDDEN)),
        "emb_ln_g": jnp.ones((1, HIDDEN), jnp.float32),
        "emb_ln_b": jnp.zeros((1, HIDDEN), jnp.float32),
        "enc": pack_encoder_params(layers),
    }
    for name in ("start", "end", "a_start", "a_end", "om_start", "om_end"):
        params[name] = {"w": nrm((HIDDEN, 1)), "b": jnp.zeros((1,), jnp.float32)}
    params["polarity"] = {"w": nrm((HIDDEN, 3)), "b": jnp.zeros((3,), jnp.float32)}
    return params


if __name__ == "__main__":
    key = jax.random.PRNGKey(0)
    pkey, ikey, tkey, skey, ekey, plkey = jax.random.split(key, 6)

    params = init_params(pkey)
    input_ids = jax.random.randint(ikey, (BATCH, SEQ), 1, VOCAB, dtype=jnp.int32)
    token_type_ids = jnp.zeros((BATCH, SEQ), jnp.int32)
    attention_mask = jnp.ones((BATCH, SEQ), jnp.float32)
    pos_tag_id = jax.random.randint(tkey, (BATCH, SEQ), 0, N_POS_TAGS, dtype=jnp.int32)
    start_pos = jax.nn.one_hot(
        jax.random.randint(skey, (BATCH,), 0, SEQ, dtype=jnp.int32), SEQ, dtype=jnp.float32)
    end_pos = jax.nn.one_hot(
        jax.random.randint(ekey, (BATCH,), 0, SEQ, dtype=jnp.int32), SEQ, dtype=jnp.float32)
    polarity_label = jax.random.randint(plkey, (BATCH,), 0, 3, dtype=jnp.int32)

    outs = mrc_forward(params, input_ids, token_type_ids, attention_mask,
                       start_pos, end_pos, polarity_label, pos_tag_id, mode="aspect")
    outs = jax.block_until_ready(outs)
    start_logits, end_logits, total_loss, pol_softmax, polarity_loss = outs

    assert start_logits.shape == (BATCH, SEQ)
    assert end_logits.shape == (BATCH, SEQ)
    assert total_loss.shape == ()
    assert pol_softmax.shape == (BATCH, 3)
    assert polarity_loss.shape == ()
    assert bool(jnp.all(jnp.isfinite(start_logits)))
    assert bool(jnp.all(jnp.isfinite(end_logits)))
    assert bool(jnp.all(jnp.isfinite(pol_softmax)))
    assert bool(jnp.isfinite(total_loss))
    assert bool(jnp.isfinite(polarity_loss))
    print("KERNEL_OK")
</pallas_src>

<mosaic_0001>
module attributes {stable_mosaic.version = 11 : i64} {
  func.func @_bert_encoder_kernel(%arg0: i32, %arg1: memref<32x128xf32, #tpu.memory_space<vmem>>, %arg2: memref<32x32xf32, #tpu.memory_space<vmem>>, %arg3: memref<1x128xf32, #tpu.memory_space<vmem>>, %arg4: memref<1x128xf32, #tpu.memory_space<vmem>>, %arg5: memref<1x128x768xbf16, #tpu.memory_space<vmem>>, %arg6: memref<1x1x768xf32, #tpu.memory_space<vmem>>, %arg7: memref<1x256x128xbf16, #tpu.memory_space<vmem>>, %arg8: memref<1x1x128xf32, #tpu.memory_space<vmem>>, %arg9: memref<1x1x128xf32, #tpu.memory_space<vmem>>, %arg10: memref<1x1x128xf32, #tpu.memory_space<vmem>>, %arg11: memref<1x128x256xbf16, #tpu.memory_space<vmem>>, %arg12: memref<1x1x256xf32, #tpu.memory_space<vmem>>, %arg13: memref<1x256x128xbf16, #tpu.memory_space<vmem>>, %arg14: memref<1x1x128xf32, #tpu.memory_space<vmem>>, %arg15: memref<1x1x128xf32, #tpu.memory_space<vmem>>, %arg16: memref<1x1x128xf32, #tpu.memory_space<vmem>>, %arg17: memref<32x128xf32, #tpu.memory_space<vmem>>) attributes {dimension_semantics = [#tpu.dimension_semantics<arbitrary>], iteration_bounds = array<i64: 2>, scalar_prefetch = 0 : i64, scratch_operands = 0 : i64, tpu.core_type = #tpu.core_type<tc>, window_params = [{pipeline_mode = #tpu.pipeline_mode<synchronous>, transform_indices = @transform_0, window_bounds = array<i64: 32, 128>}, {pipeline_mode = #tpu.pipeline_mode<synchronous>, transform_indices = @transform_1, window_bounds = array<i64: 32, 32>}, {pipeline_mode = #tpu.pipeline_mode<synchronous>, transform_indices = @transform_2, window_bounds = array<i64: 1, 128>}, {pipeline_mode = #tpu.pipeline_mode<synchronous>, transform_indices = @transform_3, window_bounds = array<i64: 1, 128>}, {transform_indices = @transform_4, window_bounds = array<i64: 1, 128, 768>}, {transform_indices = @transform_5, window_bounds = array<i64: 1, 1, 768>}, {transform_indices = @transform_6, window_bounds = array<i64: 1, 256, 128>}, {transform_indices = @transform_7, window_bounds = array<i64: 1, 1, 128>}, {transform_indices = @transform_8, window_bounds = array<i64: 1, 1, 128>}, {transform_indices = @transform_9, window_bounds = array<i64: 1, 1, 128>}, {transform_indices = @transform_10, window_bounds = array<i64: 1, 128, 256>}, {transform_indices = @transform_11, window_bounds = array<i64: 1, 1, 256>}, {transform_indices = @transform_12, window_bounds = array<i64: 1, 256, 128>}, {transform_indices = @transform_13, window_bounds = array<i64: 1, 1, 128>}, {transform_indices = @transform_14, window_bounds = array<i64: 1, 1, 128>}, {transform_indices = @transform_15, window_bounds = array<i64: 1, 1, 128>}, {pipeline_mode = #tpu.pipeline_mode<synchronous>, transform_indices = @transform_16, window_bounds = array<i64: 32, 128>}]} {
    %c0_i32 = arith.constant 0 : i32
    %0 = arith.cmpi eq, %arg0, %c0_i32 : i32
    %1 = arith.extui %0 : i1 to i32
    %c0_i32_0 = arith.constant 0 : i32
    %2 = arith.cmpi ne, %1, %c0_i32_0 : i32
    scf.if %2 {
      %c0_67 = arith.constant 0 : index
      %c0_68 = arith.constant 0 : index
      %139 = vector.load %arg1[%c0_67, %c0_68] : memref<32x128xf32, #tpu.memory_space<vmem>>, vector<32x128xf32>
      %c0_69 = arith.constant 0 : index
      %c0_70 = arith.constant 0 : index
      %140 = vector.load %arg3[%c0_69, %c0_70] : memref<1x128xf32, #tpu.memory_space<vmem>>, vector<1x128xf32>
      %c0_71 = arith.constant 0 : index
      %c0_72 = arith.constant 0 : index
      %141 = vector.load %arg4[%c0_71, %c0_72] : memref<1x128xf32, #tpu.memory_space<vmem>>, vector<1x128xf32>
      %cst_73 = arith.constant dense<0.000000e+00> : vector<32xf32>
      %142 = vector.multi_reduction <add>, %139, %cst_73 [1] : vector<32x128xf32> to vector<32xf32>
      %143 = vector.shape_cast %142 : vector<32xf32> to vector<32x1xf32>
      %cst_74 = arith.constant 1.280000e+02 : f32
      %144 = vector.broadcast %cst_74 : f32 to vector<32x1xf32>
      %145 = arith.divf %143, %144 : vector<32x1xf32>
      %146 = vector.broadcast %145 : vector<32x1xf32> to vector<32x128xf32>
      %147 = arith.subf %139, %146 : vector<32x128xf32>
      %148 = arith.mulf %147, %147 : vector<32x128xf32>
      %cst_75 = arith.constant dense<0.000000e+00> : vector<32xf32>
      %149 = vector.multi_reduction <add>, %148, %cst_75 [1] : vector<32x128xf32> to vector<32xf32>
      %150 = vector.shape_cast %149 : vector<32xf32> to vector<32x1xf32>
      %cst_76 = arith.constant 1.280000e+02 : f32
      %151 = vector.broadcast %cst_76 : f32 to vector<32x1xf32>
      %152 = arith.divf %150, %151 : vector<32x1xf32>
      %153 = vector.broadcast %145 : vector<32x1xf32> to vector<32x128xf32>
      %154 = arith.subf %139, %153 : vector<32x128xf32>
      %cst_77 = arith.constant 9.99999996E-13 : f32
      %155 = vector.broadcast %cst_77 : f32 to vector<32x1xf32>
      %156 = arith.addf %152, %155 : vector<32x1xf32>
      %157 = math.rsqrt %156 : vector<32x1xf32>
      %158 = vector.broadcast %157 : vector<32x1xf32> to vector<32x128xf32>
      %159 = arith.mulf %154, %158 : vector<32x128xf32>
      %160 = vector.broadcast %140 : vector<1x128xf32> to vector<32x128xf32>
      %161 = arith.mulf %159, %160 : vector<32x128xf32>
      %162 = vector.broadcast %141 : vector<1x128xf32> to vector<32x128xf32>
      %163 = arith.addf %161, %162 : vector<32x128xf32>
      %c0_78 = arith.constant 0 : index
      %c0_79 = arith.constant 0 : index
      %164 = vector.load %arg17[%c0_78, %c0_79] : memref<32x128xf32, #tpu.memory_space<vmem>>, vector<32x128xf32>
      tpu.vector_store %arg17[%c0_78, %c0_79], %163 {strides = array<i32>} : memref<32x128xf32, #tpu.memory_space<vmem>>, vector<32x128xf32>,
    } else {
    }
    %c0 = arith.constant 0 : index
    %c0_1 = arith.constant 0 : index
    %3 = vector.load %arg17[%c0, %c0_1] : memref<32x128xf32, #tpu.memory_space<vmem>>, vector<32x128xf32>
    %c0_2 = arith.constant 0 : index
    %c0_3 = arith.constant 0 : index
    %4 = vector.load %arg2[%c0_2, %c0_3] : memref<32x32xf32, #tpu.memory_space<vmem>>, vector<32x32xf32>
    %5 = arith.truncf %3 : vector<32x128xf32> to vector<32x128xbf16>
    %c0_4 = arith.constant 0 : index
    %c0_5 = arith.constant 0 : index
    %c0_6 = arith.constant 0 : index
    %6 = vector.load %arg5[%c0_4, %c0_5, %c0_6] : memref<1x128x768xbf16, #tpu.memory_space<vmem>>, vector<1x128x768xbf16>
    %7 = vector.shape_cast %6 : vector<1x128x768xbf16> to vector<128x768xbf16>
    %cst = arith.constant dense<0.000000e+00> : vector<32x768xf32>
    %8 = tpu.matmul %5, %7, %cst {dimension_numbers = #tpu.dot_dimension_numbers<[1], [0], [0], [1], [0, 0, 1, 1], [], []>} : vector<32x128xbf16>, vector<128x768xbf16>, vector<32x768xf32> -> vector<32x768xf32>
    %c0_7 = arith.constant 0 : index
    %c0_8 = arith.constant 0 : index
    %c0_9 = arith.constant 0 : index
    %9 = vector.load %arg6[%c0_7, %c0_8, %c0_9] : memref<1x1x768xf32, #tpu.memory_space<vmem>>, vector<1x1x768xf32>
    %10 = vector.shape_cast %9 : vector<1x1x768xf32> to vector<1x768xf32>
    %11 = vector.broadcast %10 : vector<1x768xf32> to vector<32x768xf32>
    %12 = arith.addf %8, %11 : vector<32x768xf32>
    %13 = arith.truncf %12 : vector<32x768xf32> to vector<32x768xbf16>
    %14 = vector.extract_strided_slice %13 {offsets = [0, 0], sizes = [32, 128], strides = [1, 1]} : vector<32x768xbf16> to vector<32x128xbf16>
    %15 = vector.extract_strided_slice %13 {offsets = [0, 256], sizes = [32, 128], strides = [1, 1]} : vector<32x768xbf16> to vector<32x128xbf16>
    %16 = vector.extract_strided_slice %13 {offsets = [0, 512], sizes = [32, 128], strides = [1, 1]} : vector<32x768xbf16> to vector<32x128xbf16>
    %cst_10 = arith.constant dense<0.000000e+00> : vector<32x32xf32>
    %17 = tpu.matmul %14, %15, %cst_10 {dimension_numbers = #tpu.dot_dimension_numbers<[1], [1], [0], [0], [0, 0, 1, 0], [], []>} : vector<32x128xbf16>, vector<32x128xbf16>, vector<32x32xf32> -> vector<32x32xf32>
    %18 = arith.addf %17, %4 : vector<32x32xf32>
    %cst_11 = arith.constant dense<0xFF800000> : vector<32xf32>
    %19 = vector.multi_reduction <maximumf>, %18, %cst_11 [1] : vector<32x32xf32> to vector<32xf32>
    %20 = vector.shape_cast %19 : vector<32xf32> to vector<32x1xf32>
    %21 = vector.broadcast %20 : vector<32x1xf32> to vector<32x32xf32>
    %22 = arith.subf %18, %21 : vector<32x32xf32>
    %23 = math.exp %22 : vector<32x32xf32>
    %cst_12 = arith.constant dense<0.000000e+00> : vector<32xf32>
    %24 = vector.multi_reduction <add>, %23, %cst_12 [1] : vector<32x32xf32> to vector<32xf32>
    %25 = vector.shape_cast %24 : vector<32xf32> to vector<32x1xf32>
    %26 = vector.broadcast %25 : vector<32x1xf32> to vector<32x32xf32>
    %27 = arith.divf %23, %26 : vector<32x32xf32>
    %28 = arith.truncf %27 : vector<32x32xf32> to vector<32x32xbf16>
    %cst_13 = arith.constant dense<0.000000e+00> : vector<32x128xf32>
    %29 = tpu.matmul %28, %16, %cst_13 {dimension_numbers = #tpu.dot_dimension_numbers<[1], [0], [0], [1], [0, 0, 1, 1], [], []>} : vector<32x32xbf16>, vector<32x128xbf16>, vector<32x128xf32> -> vector<32x128xf32>
    %30 = vector.extract_strided_slice %13 {offsets = [0, 128], sizes = [32, 128], strides = [1, 1]} : vector<32x768xbf16> to vector<32x128xbf16>
    %31 = vector.extract_strided_slice %13 {offsets = [0, 384], sizes = [32, 128], strides = [1, 1]} : vector<32x768xbf16> to vector<32x128xbf16>
    %32 = vector.extract_strided_slice %13 {offsets = [0, 640], sizes = [32, 128], strides = [1, 1]} : vector<32x768xbf16> to vector<32x128xbf16>
    %cst_14 = arith.constant dense<0.000000e+00> : vector<32x32xf32>
    %33 = tpu.matmul %30, %31, %cst_14 {dimension_numbers = #tpu.dot_dimension_numbers<[1], [1], [0], [0], [0, 0, 1, 0], [], []>} : vector<32x128xbf16>, vector<32x128xbf16>, vector<32x32xf32> -> vector<32x32xf32>
    %34 = arith.addf %33, %4 : vector<32x32xf32>
    %cst_15 = arith.constant dense<0xFF800000> : vector<32xf32>
    %35 = vector.multi_reduction <maximumf>, %34, %cst_15 [1] : vector<32x32xf32> to vector<32xf32>
    %36 = vector.shape_cast %35 : vector<32xf32> to vector<32x1xf32>
    %37 = vector.broadcast %36 : vector<32x1xf32> to vector<32x32xf32>
    %38 = arith.subf %34, %37 : vector<32x32xf32>
    %39 = math.exp %38 : vector<32x32xf32>
    %cst_16 = arith.constant dense<0.000000e+00> : vector<32xf32>
    %40 = vector.multi_reduction <add>, %39, %cst_16 [1] : vector<32x32xf32> to vector<32xf32>
    %41 = vector.shape_cast %40 : vector<32xf32> to vector<32x1xf32>
    %42 = vector.broadcast %41 : vector<32x1xf32> to vector<32x32xf32>
    %43 = arith.divf %39, %42 : vector<32x32xf32>
    %44 = arith.truncf %43 : vector<32x32xf32> to vector<32x32xbf16>
    %cst_17 = arith.constant dense<0.000000e+00> : vector<32x128xf32>
    %45 = tpu.matmul %44, %32, %cst_17 {dimension_numbers = #tpu.dot_dimension_numbers<[1], [0], [0], [1], [0, 0, 1, 1], [], []>} : vector<32x32xbf16>, vector<32x128xbf16>, vector<32x128xf32> -> vector<32x128xf32>
    %46 = tpu.concatenate %29, %45 in 1 : vector<32x128xf32>, vector<32x128xf32> -> vector<32x256xf32>
    %47 = arith.truncf %46 : vector<32x256xf32> to vector<32x256xbf16>
    %c0_18 = arith.constant 0 : index
    %c0_19 = arith.constant 0 : index
    %c0_20 = arith.constant 0 : index
    %48 = vector.load %arg7[%c0_18, %c0_19, %c0_20] : memref<1x256x128xbf16, #tpu.memory_space<vmem>>, vector<1x256x128xbf16>
    %49 = vector.shape_cast %48 : vector<1x256x128xbf16> to vector<256x128xbf16>
    %cst_21 = arith.constant dense<0.000000e+00> : vector<32x128xf32>
    %50 = tpu.matmul %47, %49, %cst_21 {dimension_numbers = #tpu.dot_dimension_numbers<[1], [0], [0], [1], [0, 0, 1, 1], [], []>} : vector<32x256xbf16>, vector<256x128xbf16>, vector<32x128xf32> -> vector<32x128xf32>
    %c0_22 = arith.constant 0 : index
    %c0_23 = arith.constant 0 : index
    %c0_24 = arith.constant 0 : index
    %51 = vector.load %arg8[%c0_22, %c0_23, %c0_24] : memref<1x1x128xf32, #tpu.memory_space<vmem>>, vector<1x1x128xf32>
    %52 = vector.shape_cast %51 : vector<1x1x128xf32> to vector<1x128xf32>
    %53 = vector.broadcast %52 : vector<1x128xf32> to vector<32x128xf32>
    %54 = arith.addf %50, %53 : vector<32x128xf32>
    %55 = arith.addf %54, %3 : vector<32x128xf32>
    %c0_25 = arith.constant 0 : index
    %c0_26 = arith.constant 0 : index
    %c0_27 = arith.constant 0 : index
    %56 = vector.load %arg9[%c0_25, %c0_26, %c0_27] : memref<1x1x128xf32, #tpu.memory_space<vmem>>, vector<1x1x128xf32>
    %57 = vector.shape_cast %56 : vector<1x1x128xf32> to vector<1x128xf32>
    %c0_28 = arith.constant 0 : index
    %c0_29 = arith.constant 0 : index
    %c0_30 = arith.constant 0 : index
    %58 = vector.load %arg10[%c0_28, %c0_29, %c0_30] : memref<1x1x128xf32, #tpu.memory_space<vmem>>, vector<1x1x128xf32>
    %59 = vector.shape_cast %58 : vector<1x1x128xf32> to vector<1x128xf32>
    %cst_31 = arith.constant dense<0.000000e+00> : vector<32xf32>
    %60 = vector.multi_reduction <add>, %55, %cst_31 [1] : vector<32x128xf32> to vector<32xf32>
    %61 = vector.shape_cast %60 : vector<32xf32> to vector<32x1xf32>
    %cst_32 = arith.constant 1.280000e+02 : f32
    %62 = vector.broadcast %cst_32 : f32 to vector<32x1xf32>
    %63 = arith.divf %61, %62 : vector<32x1xf32>
    %64 = vector.broadcast %63 : vector<32x1xf32> to vector<32x128xf32>
    %65 = arith.subf %55, %64 : vector<32x128xf32>
    %66 = arith.mulf %65, %65 : vector<32x128xf32>
    %cst_33 = arith.constant dense<0.000000e+00> : vector<32xf32>
    %67 = vector.multi_reduction <add>, %66, %cst_33 [1] : vector<32x128xf32> to vector<32xf32>
    %68 = vector.shape_cast %67 : vector<32xf32> to vector<32x1xf32>
    %cst_34 = arith.constant 1.280000e+02 : f32
    %69 = vector.broadcast %cst_34 : f32 to vector<32x1xf32>
    %70 = arith.divf %68, %69 : vector<32x1xf32>
    %71 = vector.broadcast %63 : vector<32x1xf32> to vector<32x128xf32>
    %72 = arith.subf %55, %71 : vector<32x128xf32>
    %cst_35 = arith.constant 9.99999996E-13 : f32
    %73 = vector.broadcast %cst_35 : f32 to vector<32x1xf32>
    %74 = arith.addf %70, %73 : vector<32x1xf32>
    %75 = math.rsqrt %74 : vector<32x1xf32>
    %76 = vector.broadcast %75 : vector<32x1xf32> to vector<32x128xf32>
    %77 = arith.mulf %72, %76 : vector<32x128xf32>
    %78 = vector.broadcast %57 : vector<1x128xf32> to vector<32x128xf32>
    %79 = arith.mulf %77, %78 : vector<32x128xf32>
    %80 = vector.broadcast %59 : vector<1x128xf32> to vector<32x128xf32>
    %81 = arith.addf %79, %80 : vector<32x128xf32>
    %82 = arith.truncf %81 : vector<32x128xf32> to vector<32x128xbf16>
    %c0_36 = arith.constant 0 : index
    %c0_37 = arith.constant 0 : index
    %c0_38 = arith.constant 0 : index
    %83 = vector.load %arg11[%c0_36, %c0_37, %c0_38] : memref<1x128x256xbf16, #tpu.memory_space<vmem>>, vector<1x128x256xbf16>
    %84 = vector.shape_cast %83 : vector<1x128x256xbf16> to vector<128x256xbf16>
    %cst_39 = arith.constant dense<0.000000e+00> : vector<32x256xf32>
    %85 = tpu.matmul %82, %84, %cst_39 {dimension_numbers = #tpu.dot_dimension_numbers<[1], [0], [0], [1], [0, 0, 1, 1], [], []>} : vector<32x128xbf16>, vector<128x256xbf16>, vector<32x256xf32> -> vector<32x256xf32>
    %c0_40 = arith.constant 0 : index
    %c0_41 = arith.constant 0 : index
    %c0_42 = arith.constant 0 : index
    %86 = vector.load %arg12[%c0_40, %c0_41, %c0_42] : memref<1x1x256xf32, #tpu.memory_space<vmem>>, vector<1x1x256xf32>
    %87 = vector.shape_cast %86 : vector<1x1x256xf32> to vector<1x256xf32>
    %88 = vector.broadcast %87 : vector<1x256xf32> to vector<32x256xf32>
    %89 = arith.addf %85, %88 : vector<32x256xf32>
    %cst_43 = arith.constant 5.000000e-01 : f32
    %90 = vector.broadcast %cst_43 : f32 to vector<32x256xf32>
    %91 = arith.mulf %90, %89 : vector<32x256xf32>
    %cst_44 = arith.constant 4.471500e-02 : f32
    %92 = vector.broadcast %cst_44 : f32 to vector<32x256xf32>
    %93 = arith.mulf %92, %89 : vector<32x256xf32>
    %94 = arith.mulf %93, %89 : vector<32x256xf32>
    %95 = arith.mulf %94, %89 : vector<32x256xf32>
    %96 = arith.addf %89, %95 : vector<32x256xf32>
    %cst_45 = arith.constant 0.797884583 : f32
    %97 = vector.broadcast %cst_45 : f32 to vector<32x256xf32>
    %98 = arith.mulf %97, %96 : vector<32x256xf32>
    %99 = math.tanh %98 : vector<32x256xf32>
    %cst_46 = arith.constant 1.000000e+00 : f32
    %100 = vector.broadcast %cst_46 : f32 to vector<32x256xf32>
    %101 = arith.addf %100, %99 : vector<32x256xf32>
    %102 = arith.mulf %91, %101 : vector<32x256xf32>
    %103 = arith.truncf %102 : vector<32x256xf32> to vector<32x256xbf16>
    %c0_47 = arith.constant 0 : index
    %c0_48 = arith.constant 0 : index
    %c0_49 = arith.constant 0 : index
    %104 = vector.load %arg13[%c0_47, %c0_48, %c0_49] : memref<1x256x128xbf16, #tpu.memory_space<vmem>>, vector<1x256x128xbf16>
    %105 = vector.shape_cast %104 : vector<1x256x128xbf16> to vector<256x128xbf16>
    %cst_50 = arith.constant dense<0.000000e+00> : vector<32x128xf32>
    %106 = tpu.matmul %103, %105, %cst_50 {dimension_numbers = #tpu.dot_dimension_numbers<[1], [0], [0], [1], [0, 0, 1, 1], [], []>} : vector<32x256xbf16>, vector<256x128xbf16>, vector<32x128xf32> -> vector<32x128xf32>
    %c0_51 = arith.constant 0 : index
    %c0_52 = arith.constant 0 : index
    %c0_53 = arith.constant 0 : index
    %107 = vector.load %arg14[%c0_51, %c0_52, %c0_53] : memref<1x1x128xf32, #tpu.memory_space<vmem>>, vector<1x1x128xf32>
    %108 = vector.shape_cast %107 : vector<1x1x128xf32> to vector<1x128xf32>
    %109 = vector.broadcast %108 : vector<1x128xf32> to vector<32x128xf32>
    %110 = arith.addf %106, %109 : vector<32x128xf32>
    %111 = arith.addf %110, %81 : vector<32x128xf32>
    %c0_54 = arith.constant 0 : index
    %c0_55 = arith.constant 0 : index
    %c0_56 = arith.constant 0 : index
    %112 = vector.load %arg15[%c0_54, %c0_55, %c0_56] : memref<1x1x128xf32, #tpu.memory_space<vmem>>, vector<1x1x128xf32>
    %113 = vector.shape_cast %112 : vector<1x1x128xf32> to vector<1x128xf32>
    %c0_57 = arith.constant 0 : index
    %c0_58 = arith.constant 0 : index
    %c0_59 = arith.constant 0 : index
    %114 = vector.load %arg16[%c0_57, %c0_58, %c0_59] : memref<1x1x128xf32, #tpu.memory_space<vmem>>, vector<1x1x128xf32>
    %115 = vector.shape_cast %114 : vector<1x1x128xf32> to vector<1x128xf32>
    %cst_60 = arith.constant dense<0.000000e+00> : vector<32xf32>
    %116 = vector.multi_reduction <add>, %111, %cst_60 [1] : vector<32x128xf32> to vector<32xf32>
    %117 = vector.shape_cast %116 : vector<32xf32> to vector<32x1xf32>
    %cst_61 = arith.constant 1.280000e+02 : f32
    %118 = vector.broadcast %cst_61 : f32 to vector<32x1xf32>
    %119 = arith.divf %117, %118 : vector<32x1xf32>
    %120 = vector.broadcast %119 : vector<32x1xf32> to vector<32x128xf32>
    %121 = arith.subf %111, %120 : vector<32x128xf32>
    %122 = arith.mulf %121, %121 : vector<32x128xf32>
    %cst_62 = arith.constant dense<0.000000e+00> : vector<32xf32>
    %123 = vector.multi_reduction <add>, %122, %cst_62 [1] : vector<32x128xf32> to vector<32xf32>
    %124 = vector.shape_cast %123 : vector<32xf32> to vector<32x1xf32>
    %cst_63 = arith.constant 1.280000e+02 : f32
    %125 = vector.broadcast %cst_63 : f32 to vector<32x1xf32>
    %126 = arith.divf %124, %125 : vector<32x1xf32>
    %127 = vector.broadcast %119 : vector<32x1xf32> to vector<32x128xf32>
    %128 = arith.subf %111, %127 : vector<32x128xf32>
    %cst_64 = arith.constant 9.99999996E-13 : f32
    %129 = vector.broadcast %cst_64 : f32 to vector<32x1xf32>
    %130 = arith.addf %126, %129 : vector<32x1xf32>
    %131 = math.rsqrt %130 : vector<32x1xf32>
    %132 = vector.broadcast %131 : vector<32x1xf32> to vector<32x128xf32>
    %133 = arith.mulf %128, %132 : vector<32x128xf32>
    %134 = vector.broadcast %113 : vector<1x128xf32> to vector<32x128xf32>
    %135 = arith.mulf %133, %134 : vector<32x128xf32>
    %136 = vector.broadcast %115 : vector<1x128xf32> to vector<32x128xf32>
    %137 = arith.addf %135, %136 : vector<32x128xf32>
    %c0_65 = arith.constant 0 : index
    %c0_66 = arith.constant 0 : index
    %138 = vector.load %arg17[%c0_65, %c0_66] : memref<32x128xf32, #tpu.memory_space<vmem>>, vector<32x128xf32>
    tpu.vector_store %arg17[%c0_65, %c0_66], %137 {strides = array<i32>} : memref<32x128xf32, #tpu.memory_space<vmem>>, vector<32x128xf32>,
    return
  }
  func.func @transform_0(%arg0: i32) -> (i32, i32) {
    %c0_i32 = arith.constant 0 : i32
    %c0_i32_0 = arith.constant 0 : i32
    %c0_i32_1 = arith.constant 0 : i32
    return %c0_i32, %c0_i32_0 : i32, i32
  }
  func.func @transform_1(%arg0: i32) -> (i32, i32) {
    %c0_i32 = arith.constant 0 : i32
    %c0_i32_0 = arith.constant 0 : i32
    %c0_i32_1 = arith.constant 0 : i32
    return %c0_i32, %c0_i32_0 : i32, i32
  }
  func.func @transform_2(%arg0: i32) -> (i32, i32) {
    %c0_i32 = arith.constant 0 : i32
    %c0_i32_0 = arith.constant 0 : i32
    %c0_i32_1 = arith.constant 0 : i32
    return %c0_i32, %c0_i32_0 : i32, i32
  }
  func.func @transform_3(%arg0: i32) -> (i32, i32) {
    %c0_i32 = arith.constant 0 : i32
    %c0_i32_0 = arith.constant 0 : i32
    %c0_i32_1 = arith.constant 0 : i32
    return %c0_i32, %c0_i32_0 : i32, i32
  }
  func.func @transform_4(%arg0: i32) -> (i32, i32, i32) {
    %c0_i32 = arith.constant 0 : i32
    %c0_i32_0 = arith.constant 0 : i32
    %c0_i32_1 = arith.constant 0 : i32
    return %arg0, %c0_i32, %c0_i32_0 : i32, i32, i32
  }
  func.func @transform_5(%arg0: i32) -> (i32, i32, i32) {
    %c0_i32 = arith.constant 0 : i32
    %c0_i32_0 = arith.constant 0 : i32
    %c0_i32_1 = arith.constant 0 : i32
    return %arg0, %c0_i32, %c0_i32_0 : i32, i32, i32
  }
  func.func @transform_6(%arg0: i32) -> (i32, i32, i32) {
    %c0_i32 = arith.constant 0 : i32
    %c0_i32_0 = arith.constant 0 : i32
    %c0_i32_1 = arith.constant 0 : i32
    return %arg0, %c0_i32, %c0_i32_0 : i32, i32, i32
  }
  func.func @transform_7(%arg0: i32) -> (i32, i32, i32) {
    %c0_i32 = arith.constant 0 : i32
    %c0_i32_0 = arith.constant 0 : i32
    %c0_i32_1 = arith.constant 0 : i32
    return %arg0, %c0_i32, %c0_i32_0 : i32, i32, i32
  }
  func.func @transform_8(%arg0: i32) -> (i32, i32, i32) {
    %c0_i32 = arith.constant 0 : i32
    %c0_i32_0 = arith.constant 0 : i32
    %c0_i32_1 = arith.constant 0 : i32
    return %arg0, %c0_i32, %c0_i32_0 : i32, i32, i32
  }
  func.func @transform_9(%arg0: i32) -> (i32, i32, i32) {
    %c0_i32 = arith.constant 0 : i32
    %c0_i32_0 = arith.constant 0 : i32
    %c0_i32_1 = arith.constant 0 : i32
    return %arg0, %c0_i32, %c0_i32_0 : i32, i32, i32
  }
  func.func @transform_10(%arg0: i32) -> (i32, i32, i32) {
    %c0_i32 = arith.constant 0 : i32
    %c0_i32_0 = arith.constant 0 : i32
    %c0_i32_1 = arith.constant 0 : i32
    return %arg0, %c0_i32, %c0_i32_0 : i32, i32, i32
  }
  func.func @transform_11(%arg0: i32) -> (i32, i32, i32) {
    %c0_i32 = arith.constant 0 : i32
    %c0_i32_0 = arith.constant 0 : i32
    %c0_i32_1 = arith.constant 0 : i32
    return %arg0, %c0_i32, %c0_i32_0 : i32, i32, i32
  }
  func.func @transform_12(%arg0: i32) -> (i32, i32, i32) {
    %c0_i32 = arith.constant 0 : i32
    %c0_i32_0 = arith.constant 0 : i32
    %c0_i32_1 = arith.constant 0 : i32
    return %arg0, %c0_i32, %c0_i32_0 : i32, i32, i32
  }
  func.func @transform_13(%arg0: i32) -> (i32, i32, i32) {
    %c0_i32 = arith.constant 0 : i32
    %c0_i32_0 = arith.constant 0 : i32
    %c0_i32_1 = arith.constant 0 : i32
    return %arg0, %c0_i32, %c0_i32_0 : i32, i32, i32
  }
  func.func @transform_14(%arg0: i32) -> (i32, i32, i32) {
    %c0_i32 = arith.constant 0 : i32
    %c0_i32_0 = arith.constant 0 : i32
    %c0_i32_1 = arith.constant 0 : i32
    return %arg0, %c0_i32, %c0_i32_0 : i32, i32, i32
  }
  func.func @transform_15(%arg0: i32) -> (i32, i32, i32) {
    %c0_i32 = arith.constant 0 : i32
    %c0_i32_0 = arith.constant 0 : i32
    %c0_i32_1 = arith.constant 0 : i32
    return %arg0, %c0_i32, %c0_i32_0 : i32, i32, i32
  }
  func.func @transform_16(%arg0: i32) -> (i32, i32) {
    %c0_i32 = arith.constant 0 : i32
    %c0_i32_0 = arith.constant 0 : i32
    %c0_i32_1 = arith.constant 0 : i32
    return %c0_i32, %c0_i32_0 : i32, i32
  }
}

</mosaic_0001>

<llo_original>
// kernel: squeeze.5
$region0: #{squeeze.5}
  %s0 = inlined_call_operand.vmem [shape: f32[32], index: 0, kind: input, shape index: {}]
  %s1 = inlined_call_operand.vmem [shape: f32[2,16], index: 1, kind: output, shape index: {}]
  $region1: #{squeeze.5} parent=0
    #allocation0 [shape = 'u8[4096]{0}', space=vmem, size = 0x1000, scoped, tag = 'scoped mem for output reshape']
    #allocation1 [shape = 'u8[4096]{0}', space=vmem, size = 0x1000, scoped, tag = 'scoped mem for input reshape']
    %s3 = ssub.s32 2, 1
    %v4 = vld [vmem:[%s0] sm:%s3]
    %5 = vst [vmem:[#allocation1] sm:%s3] %v4
    %v6 = vld [vmem:[#allocation1] sm:$0x1]
    %vm7 = vcmask 130048
    %8 = vst.msk [vmem:[#allocation0] sm:$0x1] %vm7, %v6
    %v9 = vld [vmem:[#allocation1] sm:$0x1]
    %10 = vrot.lane.b32.xlu0 %v9, 112
    %v11 = vpop.permute.xlu0 %10
    %vm12 = vcmask 130048
    %s13 = scalar_lea.vmem [#allocation0], 1
    %14 = vst.msk [vmem:[%s13] sm:$0x1] %vm12, %v11
    %s16 = ssub.s32 4, 1
    %v17 = vld [vmem:[#allocation0] sm:%s16]
    %s19 = ssub.s32 4, 1
    %20 = vst [vmem:[%s1] sm:%s19] %v17

// kernel: mrc_forward.1
$region0: #{mrc_forward.1}
  #allocation0 [shape = 'u32[]', space=smem, size = 0x4, offset = 0x4, fixed_abs, tag = 'smem constant byte address 0x4 - core index']
  #allocation1 [shape = 'u32[72,128]{1,0:T(1,128)}', space=vmem, size = 0x9000, scoped, tag = 'internal scratch']
  %s0 = inlined_call_operand.vmem [shape: f32[32,128], index: 0, kind: input, shape index: {}]
  %s1 = inlined_call_operand.vmem [shape: f32[32,32], index: 1, kind: input, shape index: {}]
  %s2 = inlined_call_operand.vmem [shape: f32[1,128], index: 2, kind: input, shape index: {}]
  %s3 = inlined_call_operand.vmem [shape: f32[1,128], index: 3, kind: input, shape index: {}]
  %s4 = inlined_call_operand.hbm [shape: bf16[2,128,768], index: 4, kind: input, shape index: {}]
  %s5 = inlined_call_operand.vmem [shape: f32[2,1,768], index: 5, kind: input, shape index: {}]
  %s6 = inlined_call_operand.vmem [shape: bf16[2,256,128], index: 6, kind: input, shape index: {}]
  %s7 = inlined_call_operand.vmem [shape: f32[2,1,128], index: 7, kind: input, shape index: {}]
  %s8 = inlined_call_operand.vmem [shape: f32[2,1,128], index: 8, kind: input, shape index: {}]
  %s9 = inlined_call_operand.vmem [shape: f32[2,1,128], index: 9, kind: input, shape index: {}]
  %s10 = inlined_call_operand.vmem [shape: bf16[2,128,256], index: 10, kind: input, shape index: {}]
  %s11 = inlined_call_operand.vmem [shape: f32[2,1,256], index: 11, kind: input, shape index: {}]
  %s12 = inlined_call_operand.vmem [shape: bf16[2,256,128], index: 12, kind: input, shape index: {}]
  %s13 = inlined_call_operand.vmem [shape: f32[2,1,128], index: 13, kind: input, shape index: {}]
  %s14 = inlined_call_operand.vmem [shape: f32[2,1,128], index: 14, kind: input, shape index: {}]
  %s15 = inlined_call_operand.vmem [shape: f32[2,1,128], index: 15, kind: input, shape index: {}]
  %s16 = inlined_call_operand.vmem [shape: f32[32,128], index: 16, kind: output, shape index: {}]
  %s17 = sld [smem:[#allocation0]]
  $region105: #{mrc_forward.1} parent=0
    _
  %s19 = ssub.s32 1, %s17
  %s20 = scalar_select 0, %s19, %s17
  $region1: #{mrc_forward.1} parent=0
    #allocation2 [shape = 'u8[393216]{0}', space=vmem, size = 0x60000, scoped, tag = 'input window, operand 4']
    #allocation3 [shape = 's32[2]{0}', space=sflag, size = 0x8, scoped, tag = 'scoped memory for mrc_forward.1']
    %21 = vsyncpa [#allocation3], 0
    %s22 = scalar_lea.sflag [#allocation3], 1
    %23 = vsyncpa %s22, 0
    loop: start=0, step=1, limit=4
    $region2: #{mrc_forward.1} parent=1 // loop_pre_header
      _
    $region3: #{mrc_forward.1} parent=1 // loop_header
      %s25 = sphi 0, %s29
      %p26 = scmp.ge.s32.totalorder %s25, 4
      %s33 = sphi 0, %s33
      %s35 = sphi 0, %s33
      %s36 = sphi 0, %s35
      %s50 = sphi 0, %s36
      %s54 = sphi 0, %s54
      %s56 = sphi 0, %s54
      %s57 = sphi 0, %s56
      %s71 = sphi 0, %s57
      %s75 = sphi 0, %s75
      %s77 = sphi 0, %s75
      %s78 = sphi 0, %s77
      %s92 = sphi 0, %s78
      %s96 = sphi 0, %s96
      %s98 = sphi 0, %s96
      %s99 = sphi 0, %s98
      %s113 = sphi 0, %s99
      %s119 = sphi 0, %s121
      %s122 = sphi 0, %s119
      %s123 = sphi 0, %s122
      %s139 = sphi 0, %s123
      %s145 = sphi 0, %s147
      %s148 = sphi 0, %s145
      %s149 = sphi 0, %s148
      %s165 = sphi 0, %s149
      %s171 = sphi 0, %s173
      %s174 = sphi 0, %s171
      %s175 = sphi 0, %s174
      %s191 = sphi 0, %s175
      %s197 = sphi 0, %s199
      %s200 = sphi 0, %s197
      %s201 = sphi 0, %s200
      %s217 = sphi 0, %s201
      %s223 = sphi 0, %s225
      %s226 = sphi 0, %s223
      %s227 = sphi 0, %s226
      %s243 = sphi 0, %s227
      %s249 = sphi 0, %s251
      %s252 = sphi 0, %s249
      %s253 = sphi 0, %s252
      %s269 = sphi 0, %s253
      %s275 = sphi 0, %s277
      %s278 = sphi 0, %s275
      %s279 = sphi 0, %s278
      %s295 = sphi 0, %s279
      %s301 = sphi 0, %s303
      %s304 = sphi 0, %s301
      %s305 = sphi 0, %s304
      %s321 = sphi 0, %s305
      %s327 = sphi 0, %s329
      %s330 = sphi 0, %s327
      %s331 = sphi 0, %s330
      %s347 = sphi 0, %s331
      %s353 = sphi 0, %s355
      %s356 = sphi 0, %s353
      %s357 = sphi 0, %s356
      %s373 = sphi 0, %s357
      %s379 = sphi 0, %s381
      %s382 = sphi 0, %s379
      %s383 = sphi 0, %s382
      %s399 = sphi 0, %s383
      %s405 = sphi 0, %s407
      %s408 = sphi 0, %s405
      %s409 = sphi 0, %s408
      %s425 = sphi 0, %s409
      %s429 = sphi 0, %s429
      %s431 = sphi 0, %s429
      %s432 = sphi 0, %s431
      %s446 = sphi 0, %s432
    $region4: #{mrc_forward.1} parent=1 // loop_header_branch
      %28 = sbr.rel (%p26) target = $region8
    $region5: #{mrc_forward.1} parent=1 // loop_body
      %s30 = ssub.s32 %s25, 1
      %s31 = ssub.s32 %s25, 2
      %s32 = sadd.s32 %s25, 1
      %s34 = sadd.s32 %s33, 1
      %p37 = scmp.eq.s32.totalorder %s25, 1
      %p38 = scmp.ne.s32.totalorder %s33, %s35
      %p39 = scmp.eq.s32.totalorder %s25, 0
      %p40 = por %p38, %p39
      %p41 = scmp.ne.s32.totalorder %s33, %s35
      %p42 = scmp.eq.s32.totalorder %s30, 1
      %p43 = por %p41, %p42
      %p44 = scmp.ne.s32.totalorder %s35, %s36
      %p45 = scmp.eq.s32.totalorder %s30, 0
      %p46 = por %p44, %p45
      %p47 = scmp.ne.s32.totalorder %s35, %s36
      %p48 = scmp.eq.s32.totalorder %s31, 1
      %p49 = por %p47, %p48
      %p51 = scmp.ne.s32.totalorder %s36, %s50
      %p52 = scmp.eq.s32.totalorder %s31, 0
      %p53 = por %p51, %p52
      %s55 = sadd.s32 %s54, 1
      %p58 = scmp.eq.s32.totalorder %s25, 1
      %p59 = scmp.ne.s32.totalorder %s54, %s56
      %p60 = scmp.eq.s32.totalorder %s25, 0
      %p61 = por %p59, %p60
      %p62 = scmp.ne.s32.totalorder %s54, %s56
      %p63 = scmp.eq.s32.totalorder %s30, 1
      %p64 = por %p62, %p63
      %p65 = scmp.ne.s32.totalorder %s56, %s57
      %p66 = scmp.eq.s32.totalorder %s30, 0
      %p67 = por %p65, %p66
      %p68 = scmp.ne.s32.totalorder %s56, %s57
      %p69 = scmp.eq.s32.totalorder %s31, 1
      %p70 = por %p68, %p69
      %p72 = scmp.ne.s32.totalorder %s57, %s71
      %p73 = scmp.eq.s32.totalorder %s31, 0
      %p74 = por %p72, %p73
      %s76 = sadd.s32 %s75, 1
      %p79 = scmp.eq.s32.totalorder %s25, 1
      %p80 = scmp.ne.s32.totalorder %s75, %s77
      %p81 = scmp.eq.s32.totalorder %s25, 0
      %p82 = por %p80, %p81
      %p83 = scmp.ne.s32.totalorder %s75, %s77
      %p84 = scmp.eq.s32.totalorder %s30, 1
      %p85 = por %p83, %p84
      %p86 = scmp.ne.s32.totalorder %s77, %s78
      %p87 = scmp.eq.s32.totalorder %s30, 0
      %p88 = por %p86, %p87
      %p89 = scmp.ne.s32.totalorder %s77, %s78
      %p90 = scmp.eq.s32.totalorder %s31, 1
      %p91 = por %p89, %p90
      %p93 = scmp.ne.s32.totalorder %s78, %s92
      %p94 = scmp.eq.s32.totalorder %s31, 0
      %p95 = por %p93, %p94
      %s97 = sadd.s32 %s96, 1
      %p100 = scmp.eq.s32.totalorder %s25, 1
      %p101 = scmp.ne.s32.totalorder %s96, %s98
      %p102 = scmp.eq.s32.totalorder %s25, 0
      %p103 = por %p101, %p102
      %p104 = scmp.ne.s32.totalorder %s96, %s98
      %p105 = scmp.eq.s32.totalorder %s30, 1
      %p106 = por %p104, %p105
      %p107 = scmp.ne.s32.totalorder %s98, %s99
      %p108 = scmp.eq.s32.totalorder %s30, 0
      %p109 = por %p107, %p108
      %p110 = scmp.ne.s32.totalorder %s98, %s99
      %p111 = scmp.eq.s32.totalorder %s31, 1
      %p112 = por %p110, %p111
      %p114 = scmp.ne.s32.totalorder %s99, %s113
      %p115 = scmp.eq.s32.totalorder %s31, 0
      %p116 = por %p114, %p115
      %s117 = ssub.s32 %s25, %s32
      %p118 = scmp.eq.s32.totalorder %s117, 0
      %s120 = sadd.s32 %s119, 1
      %s121 = scalar_select %p118, %s119, %s120
      %p124 = pneg %p118
      %p125 = scmp.eq.s32.totalorder %s25, 1
      %p126 = por %p124, %p125
      %p127 = scmp.ne.s32.totalorder %s119, %s122
      %p128 = scmp.eq.s32.totalorder %s25, 0
      %p129 = por %p127, %p128
      %p130 = scmp.ne.s32.totalorder %s119, %s122
      %p131 = scmp.eq.s32.totalorder %s30, 1
      %p132 = por %p130, %p131
      %p133 = scmp.ne.s32.totalorder %s122, %s123
      %p134 = scmp.eq.s32.totalorder %s30, 0
      %p135 = por %p133, %p134
      %p136 = scmp.ne.s32.totalorder %s122, %s123
      %p137 = scmp.eq.s32.totalorder %s31, 1
      %p138 = por %p136, %p137
      %p140 = scmp.ne.s32.totalorder %s123, %s139
      %p141 = scmp.eq.s32.totalorder %s31, 0
      %p142 = por %p140, %p141
      %s143 = ssub.s32 %s25, %s32
      %p144 = scmp.eq.s32.totalorder %s143, 0
      %s146 = sadd.s32 %s145, 1
      %s147 = scalar_select %p144, %s145, %s146
      %p150 = pneg %p144
      %p151 = scmp.eq.s32.totalorder %s25, 1
      %p152 = por %p150, %p151
      %p153 = scmp.ne.s32.totalorder %s145, %s148
      %p154 = scmp.eq.s32.totalorder %s25, 0
      %p155 = por %p153, %p154
      %p156 = scmp.ne.s32.totalorder %s145, %s148
      %p157 = scmp.eq.s32.totalorder %s30, 1
      %p158 = por %p156, %p157
      %p159 = scmp.ne.s32.totalorder %s148, %s149
      %p160 = scmp.eq.s32.totalorder %s30, 0
      %p161 = por %p159, %p160
      %p162 = scmp.ne.s32.totalorder %s148, %s149
      %p163 = scmp.eq.s32.totalorder %s31, 1
      %p164 = por %p162, %p163
      %p166 = scmp.ne.s32.totalorder %s149, %s165
      %p167 = scmp.eq.s32.totalorder %s31, 0
      %p168 = por %p166, %p167
      %s169 = ssub.s32 %s25, %s32
      %p170 = scmp.eq.s32.totalorder %s169, 0
      %s172 = sadd.s32 %s171, 1
      %s173 = scalar_select %p170, %s171, %s172
      %p176 = pneg %p170
      %p177 = scmp.eq.s32.totalorder %s25, 1
      %p178 = por %p176, %p177
      %p179 = scmp.ne.s32.totalorder %s171, %s174
      %p180 = scmp.eq.s32.totalorder %s25, 0
      %p181 = por %p179, %p180
      %p182 = scmp.ne.s32.totalorder %s171, %s174
      %p183 = scmp.eq.s32.totalorder %s30, 1
      %p184 = por %p182, %p183
      %p185 = scmp.ne.s32.totalorder %s174, %s175
      %p186 = scmp.eq.s32.totalorder %s30, 0
      %p187 = por %p185, %p186
      %p188 = scmp.ne.s32.totalorder %s174, %s175
      %p189 = scmp.eq.s32.totalorder %s31, 1
      %p190 = por %p188, %p189
      %p192 = scmp.ne.s32.totalorder %s175, %s191
      %p193 = scmp.eq.s32.totalorder %s31, 0
      %p194 = por %p192, %p193
      %s195 = ssub.s32 %s25, %s32
      %p196 = scmp.eq.s32.totalorder %s195, 0
      %s198 = sadd.s32 %s197, 1
      %s199 = scalar_select %p196, %s197, %s198
      %p202 = pneg %p196
      %p203 = scmp.eq.s32.totalorder %s25, 1
      %p204 = por %p202, %p203
      %p205 = scmp.ne.s32.totalorder %s197, %s200
      %p206 = scmp.eq.s32.totalorder %s25, 0
      %p207 = por %p205, %p206
      %p208 = scmp.ne.s32.totalorder %s197, %s200
      %p209 = scmp.eq.s32.totalorder %s30, 1
      %p210 = por %p208, %p209
      %p211 = scmp.ne.s32.totalorder %s200, %s201
      %p212 = scmp.eq.s32.totalorder %s30, 0
      %p213 = por %p211, %p212
      %p214 = scmp.ne.s32.totalorder %s200, %s201
      %p215 = scmp.eq.s32.totalorder %s31, 1
      %p216 = por %p214, %p215
      %p218 = scmp.ne.s32.totalorder %s201, %s217
      %p219 = scmp.eq.s32.totalorder %s31, 0
      %p220 = por %p218, %p219
      %s221 = ssub.s32 %s25, %s32
      %p222 = scmp.eq.s32.totalorder %s221, 0
      %s224 = sadd.s32 %s223, 1
      %s225 = scalar_select %p222, %s223, %s224
      %p228 = pneg %p222
      %p229 = scmp.eq.s32.totalorder %s25, 1
      %p230 = por %p228, %p229
      %p231 = scmp.ne.s32.totalorder %s223, %s226
      %p232 = scmp.eq.s32.totalorder %s25, 0
      %p233 = por %p231, %p232
      %p234 = scmp.ne.s32.totalorder %s223, %s226
      %p235 = scmp.eq.s32.totalorder %s30, 1
      %p236 = por %p234, %p235
      %p237 = scmp.ne.s32.totalorder %s226, %s227
      %p238 = scmp.eq.s32.totalorder %s30, 0
      %p239 = por %p237, %p238
      %p240 = scmp.ne.s32.totalorder %s226, %s227
      %p241 = scmp.eq.s32.totalorder %s31, 1
      %p242 = por %p240, %p241
      %p244 = scmp.ne.s32.totalorder %s227, %s243
      %p245 = scmp.eq.s32.totalorder %s31, 0
      %p246 = por %p244, %p245
      %s247 = ssub.s32 %s25, %s32
      %p248 = scmp.eq.s32.totalorder %s247, 0
      %s250 = sadd.s32 %s249, 1
      %s251 = scalar_select %p248, %s249, %s250
      %p254 = pneg %p248
      %p255 = scmp.eq.s32.totalorder %s25, 1
      %p256 = por %p254, %p255
      %p257 = scmp.ne.s32.totalorder %s249, %s252
      %p258 = scmp.eq.s32.totalorder %s25, 0
      %p259 = por %p257, %p258
      %p260 = scmp.ne.s32.totalorder %s249, %s252
      %p261 = scmp.eq.s32.totalorder %s30, 1
      %p262 = por %p260, %p261
      %p263 = scmp.ne.s32.totalorder %s252, %s253
      %p264 = scmp.eq.s32.totalorder %s30, 0
      %p265 = por %p263, %p264
      %p266 = scmp.ne.s32.totalorder %s252, %s253
      %p267 = scmp.eq.s32.totalorder %s31, 1
      %p268 = por %p266, %p267
      %p270 = scmp.ne.s32.totalorder %s253, %s269
      %p271 = scmp.eq.s32.totalorder %s31, 0
      %p272 = por %p270, %p271
      %s273 = ssub.s32 %s25, %s32
      %p274 = scmp.eq.s32.totalorder %s273, 0
      %s276 = sadd.s32 %s275, 1
      %s277 = scalar_select %p274, %s275, %s276
      %p280 = pneg %p274
      %p281 = scmp.eq.s32.totalorder %s25, 1
      %p282 = por %p280, %p281
      %p283 = scmp.ne.s32.totalorder %s275, %s278
      %p284 = scmp.eq.s32.totalorder %s25, 0
      %p285 = por %p283, %p284
      %p286 = scmp.ne.s32.totalorder %s275, %s278
      %p287 = scmp.eq.s32.totalorder %s30, 1
      %p288 = por %p286, %p287
      %p289 = scmp.ne.s32.totalorder %s278, %s279
      %p290 = scmp.eq.s32.totalorder %s30, 0
      %p291 = por %p289, %p290
      %p292 = scmp.ne.s32.totalorder %s278, %s279
      %p293 = scmp.eq.s32.totalorder %s31, 1
      %p294 = por %p292, %p293
      %p296 = scmp.ne.s32.totalorder %s279, %s295
      %p297 = scmp.eq.s32.totalorder %s31, 0
      %p298 = por %p296, %p297
      %s299 = ssub.s32 %s25, %s32
      %p300 = scmp.eq.s32.totalorder %s299, 0
      %s302 = sadd.s32 %s301, 1
      %s303 = scalar_select %p300, %s301, %s302
      %p306 = pneg %p300
      %p307 = scmp.eq.s32.totalorder %s25, 1
      %p308 = por %p306, %p307
      %p309 = scmp.ne.s32.totalorder %s301, %s304
      %p310 = scmp.eq.s32.totalorder %s25, 0
      %p311 = por %p309, %p310
      %p312 = scmp.ne.s32.totalorder %s301, %s304
      %p313 = scmp.eq.s32.totalorder %s30, 1
      %p314 = por %p312, %p313
      %p315 = scmp.ne.s32.totalorder %s304, %s305
      %p316 = scmp.eq.s32.totalorder %s30, 0
      %p317 = por %p315, %p316
      %p318 = scmp.ne.s32.totalorder %s304, %s305
      %p319 = scmp.eq.s32.totalorder %s31, 1
      %p320 = por %p318, %p319
      %p322 = scmp.ne.s32.totalorder %s305, %s321
      %p323 = scmp.eq.s32.totalorder %s31, 0
      %p324 = por %p322, %p323
      %s325 = ssub.s32 %s25, %s32
      %p326 = scmp.eq.s32.totalorder %s325, 0
      %s328 = sadd.s32 %s327, 1
      %s329 = scalar_select %p326, %s327, %s328
      %p332 = pneg %p326
      %p333 = scmp.eq.s32.totalorder %s25, 1
      %p334 = por %p332, %p333
      %p335 = scmp.ne.s32.totalorder %s327, %s330
      %p336 = scmp.eq.s32.totalorder %s25, 0
      %p337 = por %p335, %p336
      %p338 = scmp.ne.s32.totalorder %s327, %s330
      %p339 = scmp.eq.s32.totalorder %s30, 1
      %p340 = por %p338, %p339
      %p341 = scmp.ne.s32.totalorder %s330, %s331
      %p342 = scmp.eq.s32.totalorder %s30, 0
      %p343 = por %p341, %p342
      %p344 = scmp.ne.s32.totalorder %s330, %s331
      %p345 = scmp.eq.s32.totalorder %s31, 1
      %p346 = por %p344, %p345
      %p348 = scmp.ne.s32.totalorder %s331, %s347
      %p349 = scmp.eq.s32.totalorder %s31, 0
      %p350 = por %p348, %p349
      %s351 = ssub.s32 %s25, %s32
      %p352 = scmp.eq.s32.totalorder %s351, 0
      %s354 = sadd.s32 %s353, 1
      %s355 = scalar_select %p352, %s353, %s354
      %p358 = pneg %p352
      %p359 = scmp.eq.s32.totalorder %s25, 1
      %p360 = por %p358, %p359
      %p361 = scmp.ne.s32.totalorder %s353, %s356
      %p362 = scmp.eq.s32.totalorder %s25, 0
      %p363 = por %p361, %p362
      %p364 = scmp.ne.s32.totalorder %s353, %s356
      %p365 = scmp.eq.s32.totalorder %s30, 1
      %p366 = por %p364, %p365
      %p367 = scmp.ne.s32.totalorder %s356, %s357
      %p368 = scmp.eq.s32.totalorder %s30, 0
      %p369 = por %p367, %p368
      %p370 = scmp.ne.s32.totalorder %s356, %s357
      %p371 = scmp.eq.s32.totalorder %s31, 1
      %p372 = por %p370, %p371
      %p374 = scmp.ne.s32.totalorder %s357, %s373
      %p375 = scmp.eq.s32.totalorder %s31, 0
      %p376 = por %p374, %p375
      %s377 = ssub.s32 %s25, %s32
      %p378 = scmp.eq.s32.totalorder %s377, 0
      %s380 = sadd.s32 %s379, 1
      %s381 = scalar_select %p378, %s379, %s380
      %p384 = pneg %p378
      %p385 = scmp.eq.s32.totalorder %s25, 1
      %p386 = por %p384, %p385
      %p387 = scmp.ne.s32.totalorder %s379, %s382
      %p388 = scmp.eq.s32.totalorder %s25, 0
      %p389 = por %p387, %p388
      %p390 = scmp.ne.s32.totalorder %s379, %s382
      %p391 = scmp.eq.s32.totalorder %s30, 1
      %p392 = por %p390, %p391
      %p393 = scmp.ne.s32.totalorder %s382, %s383
      %p394 = scmp.eq.s32.totalorder %s30, 0
      %p395 = por %p393, %p394
      %p396 = scmp.ne.s32.totalorder %s382, %s383
      %p397 = scmp.eq.s32.totalorder %s31, 1
      %p398 = por %p396, %p397
      %p400 = scmp.ne.s32.totalorder %s383, %s399
      %p401 = scmp.eq.s32.totalorder %s31, 0
      %p402 = por %p400, %p401
      %s403 = ssub.s32 %s25, %s32
      %p404 = scmp.eq.s32.totalorder %s403, 0
      %s406 = sadd.s32 %s405, 1
      %s407 = scalar_select %p404, %s405, %s406
      %p410 = pneg %p404
      %p411 = scmp.eq.s32.totalorder %s25, 1
      %p412 = por %p410, %p411
      %p413 = scmp.ne.s32.totalorder %s405, %s408
      %p414 = scmp.eq.s32.totalorder %s25, 0
      %p415 = por %p413, %p414
      %p416 = scmp.ne.s32.totalorder %s405, %s408
      %p417 = scmp.eq.s32.totalorder %s30, 1
      %p418 = por %p416, %p417
      %p419 = scmp.ne.s32.totalorder %s408, %s409
      %p420 = scmp.eq.s32.totalorder %s30, 0
      %p421 = por %p419, %p420
      %p422 = scmp.ne.s32.totalorder %s408, %s409
      %p423 = scmp.eq.s32.totalorder %s31, 1
      %p424 = por %p422, %p423
      %p426 = scmp.ne.s32.totalorder %s409, %s425
      %p427 = scmp.eq.s32.totalorder %s31, 0
      %p428 = por %p426, %p427
      %s430 = sadd.s32 %s429, 1
      %p433 = scmp.eq.s32.totalorder %s25, 1
      %p434 = scmp.ne.s32.totalorder %s429, %s431
      %p435 = scmp.eq.s32.totalorder %s25, 0
      %p436 = por %p434, %p435
      %p437 = scmp.ne.s32.totalorder %s429, %s431
      %p438 = scmp.eq.s32.totalorder %s30, 1
      %p439 = por %p437, %p438
      %p440 = scmp.ne.s32.totalorder %s431, %s432
      %p441 = scmp.eq.s32.totalorder %s30, 0
      %p442 = por %p440, %p441
      %p443 = scmp.ne.s32.totalorder %s431, %s432
      %p444 = scmp.eq.s32.totalorder %s31, 1
      %p445 = por %p443, %p444
      %p447 = scmp.ne.s32.totalorder %s432, %s446
      %p448 = scmp.eq.s32.totalorder %s31, 0
      %p449 = por %p447, %p448
      %p450 = scmp.le.s32.totalorder 1, %s25
      %p451 = scmp.lt.s32.totalorder %s25, 3
      %p452 = pnand %p450, %p451
      %p453 = pneg %p452
      // Predicated region
      $region9: #{mrc_forward.1} parent=5 // pred_check
        _
      $region10: #{mrc_forward.1} parent=5 // pred_check_branch
        %455 = sbr.rel (%p452) target = $region12
      $region11: #{mrc_forward.1} parent=5 // pred_region
        %s456 = ssub.s32 %s25, 1
        // Predicated region
        $region13: #{mrc_forward.1} parent=11 // pred_check
          %p457 = pneg %p46
        $region14: #{mrc_forward.1} parent=11 // pred_check_branch
          %459 = sbr.rel (%p457) target = $region16
        $region15: #{mrc_forward.1} parent=11 // pred_region
          _
        $region16: #{mrc_forward.1} parent=11 // pred_fallthru
          _
        // Predicated region
        $region17: #{mrc_forward.1} parent=11 // pred_check
          %p460 = pneg %p67
        $region18: #{mrc_forward.1} parent=11 // pred_check_branch
          %462 = sbr.rel (%p460) target = $region20
        $region19: #{mrc_forward.1} parent=11 // pred_region
          _
        $region20: #{mrc_forward.1} parent=11 // pred_fallthru
          _
        // Predicated region
        $region21: #{mrc_forward.1} parent=11 // pred_check
          %p463 = pneg %p88
        $region22: #{mrc_forward.1} parent=11 // pred_check_branch
          %465 = sbr.rel (%p463) target = $region24
        $region23: #{mrc_forward.1} parent=11 // pred_region
          _
        $region24: #{mrc_forward.1} parent=11 // pred_fallthru
          _
        // Predicated region
        $region25: #{mrc_forward.1} parent=11 // pred_check
          %p466 = pneg %p109
        $region26: #{mrc_forward.1} parent=11 // pred_check_branch
          %468 = sbr.rel (%p466) target = $region28
        $region27: #{mrc_forward.1} parent=11 // pred_region
          _
        $region28: #{mrc_forward.1} parent=11 // pred_fallthru
          _
      $region12: #{mrc_forward.1} parent=5 // pred_fallthru
        _
      %p469 = scmp.lt.s32.totalorder %s25, 2
      // Predicated region
      $region29: #{mrc_forward.1} parent=5 // pred_check
        %p470 = pneg %p469
      $region30: #{mrc_forward.1} parent=5 // pred_check_branch
        %472 = sbr.rel (%p470) target = $region32
      $region31: #{mrc_forward.1} parent=5 // pred_region
        // Predicated region
        $region33: #{mrc_forward.1} parent=31 // pred_check
          %p473 = pneg %p129
        $region34: #{mrc_forward.1} parent=31 // pred_check_branch
          %475 = sbr.rel (%p473) target = $region36
        $region35: #{mrc_forward.1} parent=31 // pred_region
          %s476 = sand.u32 %s119, 1
          %s477 = scalar_lea.sflag [#allocation3], %s476
          %s478 = sand.u32 %s119, 1
          %s479 = smul.addr %s478, 384
          %s480 = scalar_lea.vmem [#allocation2], %s479
          %482 = vsyncadd %s477, 0
          %s483 = smul.addr %s25, 96
          %s484 = smul.addr %s483, 4
          %s485 = scalar_lea.hbm %s4, %s484
          %s486 = sshll.u32 %s485, 4
          %s487 = int_to_ptr.hbm [resolvable:$true] %s486
          %s488 = sshll.u32 %s480, 4
          %s489 = int_to_ptr.vmem [resolvable:$true] %s488
          %494 = dma.hbm_to_vmem [thread:$0]  %s487, 6144, %s489, %s477, 384, 384, 24
        $region36: #{mrc_forward.1} parent=31 // pred_fallthru
          _
        // Predicated region
        $region37: #{mrc_forward.1} parent=31 // pred_check
          %p495 = pneg %p155
        $region38: #{mrc_forward.1} parent=31 // pred_check_branch
          %497 = sbr.rel (%p495) target = $region40
        $region39: #{mrc_forward.1} parent=31 // pred_region
          %p498 = scmp.lt.s32.totalorder %s25, 1
          %s499 = scalar_select %p498, %s25, 1
          %s500 = smul.addr %s499, 6
          %s501 = scalar_lea.vmem %s5, %s500
        $region40: #{mrc_forward.1} parent=31 // pred_fallthru
          _
        // Predicated region
        $region41: #{mrc_forward.1} parent=31 // pred_check
          %p502 = pneg %p181
        $region42: #{mrc_forward.1} parent=31 // pred_check_branch
          %504 = sbr.rel (%p502) target = $region44
        $region43: #{mrc_forward.1} parent=31 // pred_region
          %p505 = scmp.lt.s32.totalorder %s25, 1
          %s506 = scalar_select %p505, %s25, 1
          %s507 = smul.addr %s506, 32
          %s508 = smul.addr %s507, 4
          %s509 = scalar_lea.vmem %s6, %s508
        $region44: #{mrc_forward.1} parent=31 // pred_fallthru
          _
        // Predicated region
        $region45: #{mrc_forward.1} parent=31 // pred_check
          %p510 = pneg %p207
        $region46: #{mrc_forward.1} parent=31 // pred_check_branch
          %512 = sbr.rel (%p510) target = $region48
        $region47: #{mrc_forward.1} parent=31 // pred_region
          %p513 = scmp.lt.s32.totalorder %s25, 1
          %s514 = scalar_select %p513, %s25, 1
          %s515 = scalar_lea.vmem %s7, %s514
        $region48: #{mrc_forward.1} parent=31 // pred_fallthru
          _
        // Predicated region
        $region49: #{mrc_forward.1} parent=31 // pred_check
          %p516 = pneg %p233
        $region50: #{mrc_forward.1} parent=31 // pred_check_branch
          %518 = sbr.rel (%p516) target = $region52
        $region51: #{mrc_forward.1} parent=31 // pred_region
          %p519 = scmp.lt.s32.totalorder %s25, 1
          %s520 = scalar_select %p519, %s25, 1
          %s521 = scalar_lea.vmem %s8, %s520
        $region52: #{mrc_forward.1} parent=31 // pred_fallthru
          _
        // Predicated region
        $region53: #{mrc_forward.1} parent=31 // pred_check
          %p522 = pneg %p259
        $region54: #{mrc_forward.1} parent=31 // pred_check_branch
          %524 = sbr.rel (%p522) target = $region56
        $region55: #{mrc_forward.1} parent=31 // pred_region
          %p525 = scmp.lt.s32.totalorder %s25, 1
          %s526 = scalar_select %p525, %s25, 1
          %s527 = scalar_lea.vmem %s9, %s526
        $region56: #{mrc_forward.1} parent=31 // pred_fallthru
          _
        // Predicated region
        $region57: #{mrc_forward.1} parent=31 // pred_check
          %p528 = pneg %p285
        $region58: #{mrc_forward.1} parent=31 // pred_check_branch
          %530 = sbr.rel (%p528) target = $region60
        $region59: #{mrc_forward.1} parent=31 // pred_region
          %p531 = scmp.lt.s32.totalorder %s25, 1
          %s532 = scalar_select %p531, %s25, 1
          %s533 = smul.addr %s532, 32
          %s534 = smul.addr %s533, 4
          %s535 = scalar_lea.vmem %s10, %s534
        $region60: #{mrc_forward.1} parent=31 // pred_fallthru
          _
        // Predicated region
        $region61: #{mrc_forward.1} parent=31 // pred_check
          %p536 = pneg %p311
        $region62: #{mrc_forward.1} parent=31 // pred_check_branch
          %538 = sbr.rel (%p536) target = $region64
        $region63: #{mrc_forward.1} parent=31 // pred_region
          %p539 = scmp.lt.s32.totalorder %s25, 1
          %s540 = scalar_select %p539, %s25, 1
          %s541 = smul.addr %s540, 2
          %s542 = scalar_lea.vmem %s11, %s541
        $region64: #{mrc_forward.1} parent=31 // pred_fallthru
          _
        // Predicated region
        $region65: #{mrc_forward.1} parent=31 // pred_check
          %p543 = pneg %p337
        $region66: #{mrc_forward.1} parent=31 // pred_check_branch
          %545 = sbr.rel (%p543) target = $region68
        $region67: #{mrc_forward.1} parent=31 // pred_region
          %p546 = scmp.lt.s32.totalorder %s25, 1
          %s547 = scalar_select %p546, %s25, 1
          %s548 = smul.addr %s547, 32
          %s549 = smul.addr %s548, 4
          %s550 = scalar_lea.vmem %s12, %s549
        $region68: #{mrc_forward.1} parent=31 // pred_fallthru
          _
        // Predicated region
        $region69: #{mrc_forward.1} parent=31 // pred_check
          %p551 = pneg %p363
        $region70: #{mrc_forward.1} parent=31 // pred_check_branch
          %553 = sbr.rel (%p551) target = $region72
        $region71: #{mrc_forward.1} parent=31 // pred_region
          %p554 = scmp.lt.s32.totalorder %s25, 1
          %s555 = scalar_select %p554, %s25, 1
          %s556 = scalar_lea.vmem %s13, %s555
        $region72: #{mrc_forward.1} parent=31 // pred_fallthru
          _
        // Predicated region
        $region73: #{mrc_forward.1} parent=31 // pred_check
          %p557 = pneg %p389
        $region74: #{mrc_forward.1} parent=31 // pred_check_branch
          %559 = sbr.rel (%p557) target = $region76
        $region75: #{mrc_forward.1} parent=31 // pred_region
          %p560 = scmp.lt.s32.totalorder %s25, 1
          %s561 = scalar_select %p560, %s25, 1
          %s562 = scalar_lea.vmem %s14, %s561
        $region76: #{mrc_forward.1} parent=31 // pred_fallthru
          _
        // Predicated region
        $region77: #{mrc_forward.1} parent=31 // pred_check
          %p563 = pneg %p415
        $region78: #{mrc_forward.1} parent=31 // pred_check_branch
          %565 = sbr.rel (%p563) target = $region80
        $region79: #{mrc_forward.1} parent=31 // pred_region
          %p566 = scmp.lt.s32.totalorder %s25, 1
          %s567 = scalar_select %p566, %s25, 1
          %s568 = scalar_lea.vmem %s15, %s567
        $region80: #{mrc_forward.1} parent=31 // pred_fallthru
          _
      $region32: #{mrc_forward.1} parent=5 // pred_fallthru
        _
      %p569 = scmp.le.s32.totalorder 1, %s25
      %p570 = scmp.lt.s32.totalorder %s25, 3
      %p571 = pnand %p569, %p570
      %p572 = pneg %p571
      // Predicated region
      $region81: #{mrc_forward.1} parent=5 // pred_check
        _
      $region82: #{mrc_forward.1} parent=5 // pred_check_branch
        %574 = sbr.rel (%p571) target = $region84
      $region83: #{mrc_forward.1} parent=5 // pred_region
        %s575 = ssub.s32 %s25, 1
        %s576 = sand.u32 %s122, 1
        %s577 = scalar_lea.sflag [#allocation3], %s576
        %s578 = sand.u32 %s122, 1
        %s579 = smul.addr %s578, 384
        %s580 = scalar_lea.vmem [#allocation2], %s579
        // Predicated region
        $region85: #{mrc_forward.1} parent=83 // pred_check
          %p581 = pneg %p135
        $region86: #{mrc_forward.1} parent=83 // pred_check_branch
          %583 = sbr.rel (%p581) target = $region88
        $region87: #{mrc_forward.1} parent=83 // pred_region
          %585 = dma.done %s577, 6144
        $region88: #{mrc_forward.1} parent=83 // pred_fallthru
          _
        %p586 = pneg %p46
        %p587 = pneg %p43
        %p588 = pneg %p67
        %p589 = pneg %p64
        %p590 = pneg %p88
        %p591 = pneg %p85
        %p592 = pneg %p109
        %p593 = pneg %p106
        %s594 = sand.u32 %s122, 1
        %s595 = scalar_lea.sflag [#allocation3], %s594
        %s596 = sand.u32 %s122, 1
        %s597 = smul.addr %s596, 384
        %s598 = scalar_lea.vmem [#allocation2], %s597
        %p599 = pneg %p135
        %p600 = pneg %p132
        %p601 = scmp.lt.s32.totalorder %s30, 1
        %s602 = scalar_select %p601, %s30, 1
        %s603 = smul.addr %s602, 6
        %s604 = scalar_lea.vmem %s5, %s603
        %p605 = pneg %p161
        %p606 = pneg %p158
        %p607 = scmp.lt.s32.totalorder %s30, 1
        %s608 = scalar_select %p607, %s30, 1
        %s609 = smul.addr %s608, 32
        %s610 = smul.addr %s609, 4
        %s611 = scalar_lea.vmem %s6, %s610
        %p612 = pneg %p187
        %p613 = pneg %p184
        %p614 = scmp.lt.s32.totalorder %s30, 1
        %s615 = scalar_select %p614, %s30, 1
        %s616 = scalar_lea.vmem %s7, %s615
        %p617 = pneg %p213
        %p618 = pneg %p210
        %p619 = scmp.lt.s32.totalorder %s30, 1
        %s620 = scalar_select %p619, %s30, 1
        %s621 = scalar_lea.vmem %s8, %s620
        %p622 = pneg %p239
        %p623 = pneg %p236
        %p624 = scmp.lt.s32.totalorder %s30, 1
        %s625 = scalar_select %p624, %s30, 1
        %s626 = scalar_lea.vmem %s9, %s625
        %p627 = pneg %p265
        %p628 = pneg %p262
        %p629 = scmp.lt.s32.totalorder %s30, 1
        %s630 = scalar_select %p629, %s30, 1
        %s631 = smul.addr %s630, 32
        %s632 = smul.addr %s631, 4
        %s633 = scalar_lea.vmem %s10, %s632
        %p634 = pneg %p291
        %p635 = pneg %p288
        %p636 = scmp.lt.s32.totalorder %s30, 1
        %s637 = scalar_select %p636, %s30, 1
        %s638 = smul.addr %s637, 2
        %s639 = scalar_lea.vmem %s11, %s638
        %p640 = pneg %p317
        %p641 = pneg %p314
        %p642 = scmp.lt.s32.totalorder %s30, 1
        %s643 = scalar_select %p642, %s30, 1
        %s644 = smul.addr %s643, 32
        %s645 = smul.addr %s644, 4
        %s646 = scalar_lea.vmem %s12, %s645
        %p647 = pneg %p343
        %p648 = pneg %p340
        %p649 = scmp.lt.s32.totalorder %s30, 1
        %s650 = scalar_select %p649, %s30, 1
        %s651 = scalar_lea.vmem %s13, %s650
        %p652 = pneg %p369
        %p653 = pneg %p366
        %p654 = scmp.lt.s32.totalorder %s30, 1
        %s655 = scalar_select %p654, %s30, 1
        %s656 = scalar_lea.vmem %s14, %s655
        %p657 = pneg %p395
        %p658 = pneg %p392
        %p659 = scmp.lt.s32.totalorder %s30, 1
        %s660 = scalar_select %p659, %s30, 1
        %s661 = scalar_lea.vmem %s15, %s660
        %p662 = pneg %p421
        %p663 = pneg %p418
        %p664 = pneg %p442
        %p665 = pneg %p439
        %p666 = scmp.lt.s32.totalorder %s30, 1
        %s667 = scalar_select %p666, %s30, 1
        %s668 = smul.addr %s667, 6
        %s669 = scalar_lea.vmem %s5, %s668
        %p670 = scmp.lt.s32.totalorder %s30, 1
        %s671 = scalar_select %p670, %s30, 1
        %s672 = smul.addr %s671, 32
        %s673 = smul.addr %s672, 4
        %s674 = scalar_lea.vmem %s6, %s673
        %p675 = scmp.lt.s32.totalorder %s30, 1
        %s676 = scalar_select %p675, %s30, 1
        %s677 = scalar_lea.vmem %s7, %s676
        %p678 = scmp.lt.s32.totalorder %s30, 1
        %s679 = scalar_select %p678, %s30, 1
        %s680 = scalar_lea.vmem %s8, %s679
        %p681 = scmp.lt.s32.totalorder %s30, 1
        %s682 = scalar_select %p681, %s30, 1
        %s683 = scalar_lea.vmem %s9, %s682
        %p684 = scmp.lt.s32.totalorder %s30, 1
        %s685 = scalar_select %p684, %s30, 1
        %s686 = smul.addr %s685, 32
        %s687 = smul.addr %s686, 4
        %s688 = scalar_lea.vmem %s10, %s687
        %p689 = scmp.lt.s32.totalorder %s30, 1
        %s690 = scalar_select %p689, %s30, 1
        %s691 = smul.addr %s690, 2
        %s692 = scalar_lea.vmem %s11, %s691
        %p693 = scmp.lt.s32.totalorder %s30, 1
        %s694 = scalar_select %p693, %s30, 1
        %s695 = smul.addr %s694, 32
        %s696 = smul.addr %s695, 4
        %s697 = scalar_lea.vmem %s12, %s696
        %p698 = scmp.lt.s32.totalorder %s30, 1
        %s699 = scalar_select %p698, %s30, 1
        %s700 = scalar_lea.vmem %s13, %s699
        %p701 = scmp.lt.s32.totalorder %s30, 1
        %s702 = scalar_select %p701, %s30, 1
        %s703 = scalar_lea.vmem %s14, %s702
        %p704 = scmp.lt.s32.totalorder %s30, 1
        %s705 = scalar_select %p704, %s30, 1
        %s706 = scalar_lea.vmem %s15, %s705
        %p708 = scmp.eq.s32.totalorder %s30, 0
        // Predicated region
        $region89: #{mrc_forward.1} parent=83 // pred_check
          %p709 = pneg %p708
        $region90: #{mrc_forward.1} parent=83 // pred_check_branch
          %711 = sbr.rel (%p709) target = $region92
        $region91: #{mrc_forward.1} parent=83 // pred_region
          %v712 = vld [vmem:[%s0] sm:$0xff]
          %v713 = vld [vmem:[%s0 + $0x8] sm:$0xff]
          %v714 = vld [vmem:[%s0 + $0x10] sm:$0xff]
          %v715 = vld [vmem:[%s0 + $0x18] sm:$0xff]
          %v716 = vld [vmem:[%s2] sm:$0x1]
          %v717 = vld [vmem:[%s3] sm:$0x1]
          %718 = vadd.xlane.f32.xlu0 %v712
          %v719 = vpop.xlane.xlu0 %718
          %720 = vadd.xlane.f32.xlu0 %v713
          %v721 = vpop.xlane.xlu0 %720
          %722 = vadd.xlane.f32.xlu0 %v714
          %v723 = vpop.xlane.xlu0 %722
          %724 = vadd.xlane.f32.xlu0 %v715
          %v725 = vpop.xlane.xlu0 %724
          %v726 = vrcp.pop 128.0
          %v727 = vmul.f32 128.0, %v726
          %v728 = vsub.f32 1.0, %v727
          %v729 = vmul.f32 %v726, %v728
          %v730 = vadd.f32 %v726, %v729
          %vm731 = vweird.f32 %v726
          %v732 = vsel %vm731, %v726, %v730
          %v733 = vmul.f32 %v719, %v732
          %v734 = vmul.f32 %v721, %v732
          %v735 = vmul.f32 %v723, %v732
          %v736 = vmul.f32 %v725, %v732
          %v737 = vsub.f32 %v712, %v733
          %v738 = vsub.f32 %v713, %v734
          %v739 = vsub.f32 %v714, %v735
          %v740 = vsub.f32 %v715, %v736
          %v741 = vmul.f32 %v737, %v737
          %v742 = vmul.f32 %v738, %v738
          %v743 = vmul.f32 %v739, %v739
          %v744 = vmul.f32 %v740, %v740
          %745 = vadd.xlane.f32.xlu0 %v741
          %v746 = vpop.xlane.xlu0 %745
          %747 = vadd.xlane.f32.xlu0 %v742
          %v748 = vpop.xlane.xlu0 %747
          %749 = vadd.xlane.f32.xlu0 %v743
          %v750 = vpop.xlane.xlu0 %749
          %751 = vadd.xlane.f32.xlu0 %v744
          %v752 = vpop.xlane.xlu0 %751
          %v753 = vmul.f32 %v746, %v732
          %v754 = vmul.f32 %v748, %v732
          %v755 = vmul.f32 %v750, %v732
          %v756 = vmul.f32 %v752, %v732
          %v757 = vadd.f32 %v753, 1e-12
          %v758 = vadd.f32 %v754, 1e-12
          %v759 = vadd.f32 %v755, 1e-12
          %v760 = vadd.f32 %v756, 1e-12
          %v761 = vrsqrt.pop %v757
          %v762 = vmul.f32 %v761, %v757
          %v763 = vmul.f32 %v762, %v761
          %v764 = vmul.f32 0.5, %v763
          %v765 = vsub.f32 1.5, %v764
          %v766 = vmul.f32 %v761, %v765
          %vm767 = vweird.f32 %v757
          %vm768 = vweird.f32 %v761
          %vm769 = vmor %vm767, %vm768
          %v770 = vsel %vm769, %v761, %v766
          %v771 = vrsqrt.pop %v758
          %v772 = vmul.f32 %v771, %v758
          %v773 = vmul.f32 %v772, %v771
          %v774 = vmul.f32 0.5, %v773
          %v775 = vsub.f32 1.5, %v774
          %v776 = vmul.f32 %v771, %v775
          %vm777 = vweird.f32 %v758
          %vm778 = vweird.f32 %v771
          %vm779 = vmor %vm777, %vm778
          %v780 = vsel %vm779, %v771, %v776
          %v781 = vrsqrt.pop %v759
          %v782 = vmul.f32 %v781, %v759
          %v783 = vmul.f32 %v782, %v781
          %v784 = vmul.f32 0.5, %v783
          %v785 = vsub.f32 1.5, %v784
          %v786 = vmul.f32 %v781, %v785
          %vm787 = vweird.f32 %v759
          %vm788 = vweird.f32 %v781
          %vm789 = vmor %vm787, %vm788
          %v790 = vsel %vm789, %v781, %v786
          %v791 = vrsqrt.pop %v760
          %v792 = vmul.f32 %v791, %v760
          %v793 = vmul.f32 %v792, %v791
          %v794 = vmul.f32 0.5, %v793
          %v795 = vsub.f32 1.5, %v794
          %v796 = vmul.f32 %v791, %v795
          %vm797 = vweird.f32 %v760
          %vm798 = vweird.f32 %v791
          %vm799 = vmor %vm797, %vm798
          %v800 = vsel %vm799, %v791, %v796
          %v801 = vmul.f32 %v737, %v770
          %v802 = vmul.f32 %v738, %v780
          %v803 = vmul.f32 %v739, %v790
          %v804 = vmul.f32 %v740, %v800
          %v806 = vperm.slane %v716, 0
          %v808 = vmul.f32 %v801, %v806
          %v809 = vmul.f32 %v802, %v806
          %v810 = vmul.f32 %v803, %v806
          %v811 = vmul.f32 %v804, %v806
          %v813 = vperm.slane %v717, 0
          %v815 = vadd.f32 %v808, %v813
          %v816 = vadd.f32 %v809, %v813
          %v817 = vadd.f32 %v810, %v813
          %v818 = vadd.f32 %v811, %v813
          %819 = vst [vmem:[%s16] sm:$0xff] %v815
          %820 = vst [vmem:[%s16 + $0x8] sm:$0xff] %v816
          %821 = vst [vmem:[%s16 + $0x10] sm:$0xff] %v817
          %822 = vst [vmem:[%s16 + $0x18] sm:$0xff] %v818
        $region92: #{mrc_forward.1} parent=83 // pred_fallthru
          _
        %v823 = vld [vmem:[%s16] sm:$0xff]
        %v824 = vld [vmem:[%s16 + $0x8] sm:$0xff]
        %v825 = vld [vmem:[%s16 + $0x10] sm:$0xff]
        %v826 = vld [vmem:[%s16 + $0x18] sm:$0xff]
        %v827 = vld [vmem:[%s1] sm:$0xff]
        %v828 = vld [vmem:[%s1 + $0x8] sm:$0xff]
        %v829 = vld [vmem:[%s1 + $0x10] sm:$0xff]
        %v830 = vld [vmem:[%s1 + $0x18] sm:$0xff]
        %v831 = vpack.c.bf16 %v824, %v823
        %v832 = vpack.c.bf16 %v826, %v825
        %v833 = vld [vmem:[%s580] sm:$0xff]
        %v834 = vld [vmem:[%s580 + $0x8] sm:$0xff]
        %v835 = vld [vmem:[%s580 + $0x10] sm:$0xff]
        %v836 = vld [vmem:[%s580 + $0x18] sm:$0xff]
        %v837 = vld [vmem:[%s580 + $0x20] sm:$0xff]
        %v838 = vld [vmem:[%s580 + $0x28] sm:$0xff]
        %v839 = vld [vmem:[%s580 + $0x30] sm:$0xff]
        %v840 = vld [vmem:[%s580 + $0x38] sm:$0xff]
        %v841 = vld [vmem:[%s580 + $0x40] sm:$0xff]
        %v842 = vld [vmem:[%s580 + $0x48] sm:$0xff]
        %v843 = vld [vmem:[%s580 + $0x50] sm:$0xff]
        %v844 = vld [vmem:[%s580 + $0x58] sm:$0xff]
        %v845 = vld [vmem:[%s580 + $0x60] sm:$0xff]
        %v846 = vld [vmem:[%s580 + $0x68] sm:$0xff]
        %v847 = vld [vmem:[%s580 + $0x70] sm:$0xff]
        %v848 = vld [vmem:[%s580 + $0x78] sm:$0xff]
        %v849 = vld [vmem:[%s580 + $0x80] sm:$0xff]
        %v850 = vld [vmem:[%s580 + $0x88] sm:$0xff]
        %v851 = vld [vmem:[%s580 + $0x90] sm:$0xff]
        %v852 = vld [vmem:[%s580 + $0x98] sm:$0xff]
        %v853 = vld [vmem:[%s580 + $0xa0] sm:$0xff]
        %v854 = vld [vmem:[%s580 + $0xa8] sm:$0xff]
        %v855 = vld [vmem:[%s580 + $0xb0] sm:$0xff]
        %v856 = vld [vmem:[%s580 + $0xb8] sm:$0xff]
        %v857 = vld [vmem:[%s580 + $0xc0] sm:$0xff]
        %v858 = vld [vmem:[%s580 + $0xc8] sm:$0xff]
        %v859 = vld [vmem:[%s580 + $0xd0] sm:$0xff]
        %v860 = vld [vmem:[%s580 + $0xd8] sm:$0xff]
        %v861 = vld [vmem:[%s580 + $0xe0] sm:$0xff]
        %v862 = vld [vmem:[%s580 + $0xe8] sm:$0xff]
        %v863 = vld [vmem:[%s580 + $0xf0] sm:$0xff]
        %v864 = vld [vmem:[%s580 + $0xf8] sm:$0xff]
        %v865 = vld [vmem:[%s580 + $0x100] sm:$0xff]
        %v866 = vld [vmem:[%s580 + $0x108] sm:$0xff]
        %v867 = vld [vmem:[%s580 + $0x110] sm:$0xff]
        %v868 = vld [vmem:[%s580 + $0x118] sm:$0xff]
        %v869 = vld [vmem:[%s580 + $0x120] sm:$0xff]
        %v870 = vld [vmem:[%s580 + $0x128] sm:$0xff]
        %v871 = vld [vmem:[%s580 + $0x130] sm:$0xff]
        %v872 = vld [vmem:[%s580 + $0x138] sm:$0xff]
        %v873 = vld [vmem:[%s580 + $0x140] sm:$0xff]
        %v874 = vld [vmem:[%s580 + $0x148] sm:$0xff]
        %v875 = vld [vmem:[%s580 + $0x150] sm:$0xff]
        %v876 = vld [vmem:[%s580 + $0x158] sm:$0xff]
        %v877 = vld [vmem:[%s580 + $0x160] sm:$0xff]
        %v878 = vld [vmem:[%s580 + $0x168] sm:$0xff]
        %v879 = vld [vmem:[%s580 + $0x170] sm:$0xff]
        %v880 = vld [vmem:[%s580 + $0x178] sm:$0xff]
        %v881 = vld [vmem:[%s669] sm:$0x3f]
        %v883 = vperm.slane %v881, 0
        %v884 = vperm.slane %v881, 1
        %v885 = vperm.slane %v881, 2
        %v886 = vperm.slane %v881, 3
        %v887 = vperm.slane %v881, 4
        %v888 = vperm.slane %v881, 5
        %v943 = vunpack.c.l.b16 %v833
        %v944 = vunpack.c.h.b16 %v833
        %v945 = vunpack.c.l.b16 %v834
        %v946 = vunpack.c.h.b16 %v834
        %v947 = vunpack.c.l.b16 %v835
        %v948 = vunpack.c.h.b16 %v835
        %v949 = vunpack.c.l.b16 %v836
        %v950 = vunpack.c.h.b16 %v836
        %v951 = vunpack.c.l.b16 %v837
        %v952 = vunpack.c.h.b16 %v837
        %v953 = vunpack.c.l.b16 %v838
        %v954 = vunpack.c.h.b16 %v838
        %v955 = vunpack.c.l.b16 %v839
        %v956 = vunpack.c.h.b16 %v839
        %v957 = vunpack.c.l.b16 %v840
        %v958 = vunpack.c.h.b16 %v840
        %v959 = vunpack.c.l.b16 %v841
        %v960 = vunpack.c.h.b16 %v841
        %v961 = vunpack.c.l.b16 %v842
        %v962 = vunpack.c.h.b16 %v842
        %v963 = vunpack.c.l.b16 %v843
        %v964 = vunpack.c.h.b16 %v843
        %v965 = vunpack.c.l.b16 %v844
        %v966 = vunpack.c.h.b16 %v844
        %v967 = vunpack.c.l.b16 %v845
        %v968 = vunpack.c.h.b16 %v845
        %v969 = vunpack.c.l.b16 %v846
        %v970 = vunpack.c.h.b16 %v846
        %v971 = vunpack.c.l.b16 %v847
        %v972 = vunpack.c.h.b16 %v847
        %v973 = vunpack.c.l.b16 %v848
        %v974 = vunpack.c.h.b16 %v848
        %v975 = vunpack.c.l.b16 %v849
        %v976 = vunpack.c.h.b16 %v849
        %v977 = vunpack.c.l.b16 %v850
        %v978 = vunpack.c.h.b16 %v850
        %v979 = vunpack.c.l.b16 %v851
        %v980 = vunpack.c.h.b16 %v851
        %v981 = vunpack.c.l.b16 %v852
        %v982 = vunpack.c.h.b16 %v852
        %v983 = vunpack.c.l.b16 %v853
        %v984 = vunpack.c.h.b16 %v853
        %v985 = vunpack.c.l.b16 %v854
        %v986 = vunpack.c.h.b16 %v854
        %v987 = vunpack.c.l.b16 %v855
        %v988 = vunpack.c.h.b16 %v855
        %v989 = vunpack.c.l.b16 %v856
        %v990 = vunpack.c.h.b16 %v856
        %v991 = vunpack.c.l.b16 %v857
        %v992 = vunpack.c.h.b16 %v857
        %v993 = vunpack.c.l.b16 %v858
        %v994 = vunpack.c.h.b16 %v858
        %v995 = vunpack.c.l.b16 %v859
        %v996 = vunpack.c.h.b16 %v859
        %v997 = vunpack.c.l.b16 %v860
        %v998 = vunpack.c.h.b16 %v860
        %v999 = vunpack.c.l.b16 %v861
        %v1000 = vunpack.c.h.b16 %v861
        %v1001 = vunpack.c.l.b16 %v862
        %v1002 = vunpack.c.h.b16 %v862
        %v1003 = vunpack.c.l.b16 %v863
        %v1004 = vunpack.c.h.b16 %v863
        %v1005 = vunpack.c.l.b16 %v864
        %v1006 = vunpack.c.h.b16 %v864
        %v1007 = vunpack.c.l.b16 %v865
        %v1008 = vunpack.c.h.b16 %v865
        %v1009 = vunpack.c.l.b16 %v866
        %v1010 = vunpack.c.h.b16 %v866
        %v1011 = vunpack.c.l.b16 %v867
        %v1012 = vunpack.c.h.b16 %v867
        %v1013 = vunpack.c.l.b16 %v868
        %v1014 = vunpack.c.h.b16 %v868
        %v1015 = vunpack.c.l.b16 %v869
        %v1016 = vunpack.c.h.b16 %v869
        %v1017 = vunpack.c.l.b16 %v870
        %v1018 = vunpack.c.h.b16 %v870
        %v1019 = vunpack.c.l.b16 %v871
        %v1020 = vunpack.c.h.b16 %v871
        %v1021 = vunpack.c.l.b16 %v872
        %v1022 = vunpack.c.h.b16 %v872
        %v1023 = vunpack.c.l.b16 %v873
        %v1024 = vunpack.c.h.b16 %v873
        %v1025 = vunpack.c.l.b16 %v874
        %v1026 = vunpack.c.h.b16 %v874
        %v1027 = vunpack.c.l.b16 %v875
        %v1028 = vunpack.c.h.b16 %v875
        %v1029 = vunpack.c.l.b16 %v876
        %v1030 = vunpack.c.h.b16 %v876
        %v1031 = vunpack.c.l.b16 %v877
        %v1032 = vunpack.c.h.b16 %v877
        %v1033 = vunpack.c.l.b16 %v878
        %v1034 = vunpack.c.h.b16 %v878
        %v1035 = vunpack.c.l.b16 %v879
        %v1036 = vunpack.c.h.b16 %v879
        %v1037 = vunpack.c.l.b16 %v880
        %v1038 = vunpack.c.h.b16 %v880
        %v1039 = vpack.c.b16 %v949, %v943
        %v1040 = vpack.c.b16 %v950, %v944
        %v1041 = vpack.c.b16 %v951, %v945
        %v1042 = vpack.c.b16 %v952, %v946
        %v1043 = vpack.c.b16 %v953, %v947
        %v1044 = vpack.c.b16 %v954, %v948
        %v1045 = vpack.c.b16 %v961, %v955
        %v1046 = vpack.c.b16 %v962, %v956
        %v1047 = vpack.c.b16 %v963, %v957
        %v1048 = vpack.c.b16 %v964, %v958
        %v1049 = vpack.c.b16 %v965, %v959
        %v1050 = vpack.c.b16 %v966, %v960
        %v1051 = vpack.c.b16 %v973, %v967
        %v1052 = vpack.c.b16 %v974, %v968
        %v1053 = vpack.c.b16 %v975, %v969
        %v1054 = vpack.c.b16 %v976, %v970
        %v1055 = vpack.c.b16 %v977, %v971
        %v1056 = vpack.c.b16 %v978, %v972
        %v1057 = vpack.c.b16 %v985, %v979
        %v1058 = vpack.c.b16 %v986, %v980
        %v1059 = vpack.c.b16 %v987, %v981
        %v1060 = vpack.c.b16 %v988, %v982
        %v1061 = vpack.c.b16 %v989, %v983
        %v1062 = vpack.c.b16 %v990, %v984
        %v1063 = vpack.c.b16 %v997, %v991
        %v1064 = vpack.c.b16 %v998, %v992
        %v1065 = vpack.c.b16 %v999, %v993
        %v1066 = vpack.c.b16 %v1000, %v994
        %v1067 = vpack.c.b16 %v1001, %v995
        %v1068 = vpack.c.b16 %v1002, %v996
        %v1069 = vpack.c.b16 %v1009, %v1003
        %v1070 = vpack.c.b16 %v1010, %v1004
        %v1071 = vpack.c.b16 %v1011, %v1005
        %v1072 = vpack.c.b16 %v1012, %v1006
        %v1073 = vpack.c.b16 %v1013, %v1007
        %v1074 = vpack.c.b16 %v1014, %v1008
        %v1075 = vpack.c.b16 %v1021, %v1015
        %v1076 = vpack.c.b16 %v1022, %v1016
        %v1077 = vpack.c.b16 %v1023, %v1017
        %v1078 = vpack.c.b16 %v1024, %v1018
        %v1079 = vpack.c.b16 %v1025, %v1019
        %v1080 = vpack.c.b16 %v1026, %v1020
        %v1081 = vpack.c.b16 %v1033, %v1027
        %v1082 = vpack.c.b16 %v1034, %v1028
        %v1083 = vpack.c.b16 %v1035, %v1029
        %v1084 = vpack.c.b16 %v1036, %v1030
        %v1085 = vpack.c.b16 %v1037, %v1031
        %v1086 = vpack.c.b16 %v1038, %v1032
        %1135 = vmatpush.bf16.msra.mxu0 %v1081
        %1136 = vmatpush.bf16.msra.mxu0 %v1075
        %1137 = vmatpush.bf16.msra.mxu0 %v1069
        %1138 = vmatpush.bf16.msra.mxu0 %v1063
        %1139 = vmatpush.bf16.msra.mxu0 %v1057
        %1140 = vmatpush.bf16.msra.mxu0 %v1051
        %1141 = vmatpush.bf16.msra.mxu0 %v1045
        %1142 = vmatpush.bf16.msra.mxu0 %v1039
        %1143 = vmatmul.bf16.gmra.mxu0 %v831
        %v1144 = vpop.f32.mrf.mxu0
        %v1145 = vadd.f32 %v883, %v1144
        %v1146 = vpop.f32.mrf.mxu0
        %v1147 = vadd.f32 %v883, %v1146
        %1148 = vmatmul.bf16.gmra.mxu0 %v832
        %v1149 = vpop.f32.mrf.mxu0
        %v1150 = vadd.f32 %v883, %v1149
        %v1151 = vpop.f32.mrf.mxu0
        %v1152 = vadd.f32 %v883, %v1151
        %1153 = vdwg.mxu0
        %1154 = vmatpush.bf16.msra.mxu0 %v1082
        %1155 = vmatpush.bf16.msra.mxu0 %v1076
        %1156 = vmatpush.bf16.msra.mxu0 %v1070
        %1157 = vmatpush.bf16.msra.mxu0 %v1064
        %1158 = vmatpush.bf16.msra.mxu0 %v1058
        %1159 = vmatpush.bf16.msra.mxu0 %v1052
        %1160 = vmatpush.bf16.msra.mxu0 %v1046
        %1161 = vmatpush.bf16.msra.mxu0 %v1040
        %1162 = vmatmul.bf16.gmra.mxu0 %v831
        %v1163 = vpop.f32.mrf.mxu0
        %v1164 = vadd.f32 %v884, %v1163
        %v1165 = vpop.f32.mrf.mxu0
        %v1166 = vadd.f32 %v884, %v1165
        %1167 = vmatmul.bf16.gmra.mxu0 %v832
        %v1168 = vpop.f32.mrf.mxu0
        %v1169 = vadd.f32 %v884, %v1168
        %v1170 = vpop.f32.mrf.mxu0
        %v1171 = vadd.f32 %v884, %v1170
        %1172 = vdwg.mxu0
        %1173 = vmatpush.bf16.msra.mxu0 %v1083
        %1174 = vmatpush.bf16.msra.mxu0 %v1077
        %1175 = vmatpush.bf16.msra.mxu0 %v1071
        %1176 = vmatpush.bf16.msra.mxu0 %v1065
        %1177 = vmatpush.bf16.msra.mxu0 %v1059
        %1178 = vmatpush.bf16.msra.mxu0 %v1053
        %1179 = vmatpush.bf16.msra.mxu0 %v1047
        %1180 = vmatpush.bf16.msra.mxu0 %v1041
        %1181 = vmatmul.bf16.gmra.mxu0 %v831
        %v1182 = vpop.f32.mrf.mxu0
        %v1183 = vadd.f32 %v885, %v1182
        %v1184 = vpop.f32.mrf.mxu0
        %v1185 = vadd.f32 %v885, %v1184
        %1186 = vmatmul.bf16.gmra.mxu0 %v832
        %v1187 = vpop.f32.mrf.mxu0
        %v1188 = vadd.f32 %v885, %v1187
        %v1189 = vpop.f32.mrf.mxu0
        %v1190 = vadd.f32 %v885, %v1189
        %1191 = vdwg.mxu0
        %1192 = vmatpush.bf16.msra.mxu0 %v1084
        %1193 = vmatpush.bf16.msra.mxu0 %v1078
        %1194 = vmatpush.bf16.msra.mxu0 %v1072
        %1195 = vmatpush.bf16.msra.mxu0 %v1066
        %1196 = vmatpush.bf16.msra.mxu0 %v1060
        %1197 = vmatpush.bf16.msra.mxu0 %v1054
        %1198 = vmatpush.bf16.msra.mxu0 %v1048
        %1199 = vmatpush.bf16.msra.mxu0 %v1042
        %1200 = vmatmul.bf16.gmra.mxu0 %v831
        %v1201 = vpop.f32.mrf.mxu0
        %v1202 = vadd.f32 %v886, %v1201
        %v1203 = vpop.f32.mrf.mxu0
        %v1204 = vadd.f32 %v886, %v1203
        %1205 = vmatmul.bf16.gmra.mxu0 %v832
        %v1206 = vpop.f32.mrf.mxu0
        %v1207 = vadd.f32 %v886, %v1206
        %v1208 = vpop.f32.mrf.mxu0
        %v1209 = vadd.f32 %v886, %v1208
        %1210 = vdwg.mxu0
        %1211 = vmatpush.bf16.msra.mxu0 %v1085
        %1212 = vmatpush.bf16.msra.mxu0 %v1079
        %1213 = vmatpush.bf16.msra.mxu0 %v1073
        %1214 = vmatpush.bf16.msra.mxu0 %v1067
        %1215 = vmatpush.bf16.msra.mxu0 %v1061
        %1216 = vmatpush.bf16.msra.mxu0 %v1055
        %1217 = vmatpush.bf16.msra.mxu0 %v1049
        %1218 = vmatpush.bf16.msra.mxu0 %v1043
        %1219 = vmatmul.bf16.gmra.mxu0 %v831
        %v1220 = vpop.f32.mrf.mxu0
        %v1221 = vadd.f32 %v887, %v1220
        %v1222 = vpop.f32.mrf.mxu0
        %v1223 = vadd.f32 %v887, %v1222
        %1224 = vmatmul.bf16.gmra.mxu0 %v832
        %v1225 = vpop.f32.mrf.mxu0
        %v1226 = vadd.f32 %v887, %v1225
        %v1227 = vpop.f32.mrf.mxu0
        %v1228 = vadd.f32 %v887, %v1227
        %1229 = vdwg.mxu0
        %1230 = vmatpush.bf16.msra.mxu0 %v1086
        %1231 = vmatpush.bf16.msra.mxu0 %v1080
        %1232 = vmatpush.bf16.msra.mxu0 %v1074
        %1233 = vmatpush.bf16.msra.mxu0 %v1068
        %1234 = vmatpush.bf16.msra.mxu0 %v1062
        %1235 = vmatpush.bf16.msra.mxu0 %v1056
        %1236 = vmatpush.bf16.msra.mxu0 %v1050
        %1237 = vmatpush.bf16.msra.mxu0 %v1044
        %1238 = vmatmul.bf16.gmra.mxu0 %v831
        %v1239 = vpop.f32.mrf.mxu0
        %v1240 = vadd.f32 %v888, %v1239
        %v1241 = vpop.f32.mrf.mxu0
        %v1242 = vadd.f32 %v888, %v1241
        %1243 = vmatmul.bf16.gmra.mxu0 %v832
        %v1244 = vpop.f32.mrf.mxu0
        %v1245 = vadd.f32 %v888, %v1244
        %v1246 = vpop.f32.mrf.mxu0
        %v1247 = vadd.f32 %v888, %v1246
        %1248 = vdwg.mxu0
        %v1249 = vpack.c.bf16 %v1164, %v1145
        %v1250 = vpack.c.bf16 %v1202, %v1183
        %v1251 = vpack.c.bf16 %v1240, %v1221
        %v1252 = vpack.c.bf16 %v1166, %v1147
        %v1253 = vpack.c.bf16 %v1204, %v1185
        %v1254 = vpack.c.bf16 %v1242, %v1223
        %v1255 = vpack.c.bf16 %v1169, %v1150
        %v1256 = vpack.c.bf16 %v1207, %v1188
        %v1257 = vpack.c.bf16 %v1245, %v1226
        %v1258 = vpack.c.bf16 %v1171, %v1152
        %v1259 = vpack.c.bf16 %v1209, %v1190
        %v1260 = vpack.c.bf16 %v1247, %v1228
        %v1265 = vunpack.c.l.b16 %v1249
        %v1266 = vunpack.c.l.b16 %v1252
        %v1267 = vunpack.c.l.b16 %v1255
        %v1268 = vunpack.c.l.b16 %v1258
        %v1269 = vpack.c.b16 %v1266, %v1265
        %v1270 = vpack.c.b16 %v1268, %v1267
        %v1277 = vunpack.c.l.b16 %v1250
        %v1278 = vunpack.c.l.b16 %v1253
        %v1279 = vunpack.c.l.b16 %v1256
        %v1280 = vunpack.c.l.b16 %v1259
        %v1281 = vpack.c.b16 %v1278, %v1277
        %v1282 = vpack.c.b16 %v1280, %v1279
        %1285 = vmatpush.bf16.xpose.msra.mxu0 0
        %1286 = vmatpush.bf16.xpose.msra.mxu0 0
        %1287 = vmatpush.bf16.xpose.msra.mxu0 0
        %1288 = vmatpush.bf16.xpose.msra.mxu0 0
        %1289 = vmatpush.bf16.xpose.msra.mxu0 0
        %1290 = vmatpush.bf16.xpose.msra.mxu0 0
        %1291 = vmatpush.bf16.xpose.msra.mxu0 %v1282
        %1292 = vmatpush.bf16.xpose.msra.mxu0 %v1281
        %1293 = vmatmul.bf16.gmra.mxu0 %v1269
        %v1294 = vpop.f32.mrf.mxu0
        %v1295 = vadd.f32 %v827, %v1294
        %v1296 = vpop.f32.mrf.mxu0
        %v1297 = vadd.f32 %v828, %v1296
        %1298 = vmatmul.bf16.gmra.mxu0 %v1270
        %v1299 = vpop.f32.mrf.mxu0
        %v1300 = vadd.f32 %v829, %v1299
        %v1301 = vpop.f32.mrf.mxu0
        %v1302 = vadd.f32 %v830, %v1301
        %1303 = vdwg.mxu0
        %vm1304 = vcmask 261120
        %v1305 = vsel %vm1304, %v1295, -inf
        %1306 = vmax.xlane.f32.xlu0 %v1305
        %v1307 = vpop.xlane.xlu0 %1306
        %v1308 = vsel %vm1304, %v1297, -inf
        %1309 = vmax.xlane.f32.xlu0 %v1308
        %v1310 = vpop.xlane.xlu0 %1309
        %v1311 = vsel %vm1304, %v1300, -inf
        %1312 = vmax.xlane.f32.xlu0 %v1311
        %v1313 = vpop.xlane.xlu0 %1312
        %v1314 = vsel %vm1304, %v1302, -inf
        %1315 = vmax.xlane.f32.xlu0 %v1314
        %v1316 = vpop.xlane.xlu0 %1315
        %v1317 = vsub.f32 %v1295, %v1307
        %v1318 = vsub.f32 %v1297, %v1310
        %v1319 = vsub.f32 %v1300, %v1313
        %v1320 = vsub.f32 %v1302, %v1316
        %v1321 = vmul.f32 %v1317, 1.442695
        %v1322 = vpow.pop %v1321
        %v1323 = vmul.f32 %v1318, 1.442695
        %v1324 = vpow.pop %v1323
        %v1325 = vmul.f32 %v1319, 1.442695
        %v1326 = vpow.pop %v1325
        %v1327 = vmul.f32 %v1320, 1.442695
        %v1328 = vpow.pop %v1327
        %v1329 = vsel %vm1304, %v1322, 0.0
        %1330 = vadd.xlane.f32.xlu0 %v1329
        %v1331 = vpop.xlane.xlu0 %1330
        %v1332 = vsel %vm1304, %v1324, 0.0
        %1333 = vadd.xlane.f32.xlu0 %v1332
        %v1334 = vpop.xlane.xlu0 %1333
        %v1335 = vsel %vm1304, %v1326, 0.0
        %1336 = vadd.xlane.f32.xlu0 %v1335
        %v1337 = vpop.xlane.xlu0 %1336
        %v1338 = vsel %vm1304, %v1328, 0.0
        %1339 = vadd.xlane.f32.xlu0 %v1338
        %v1340 = vpop.xlane.xlu0 %1339
        %v1341 = vrcp.pop %v1331
        %v1342 = vmul.f32 %v1331, %v1341
        %v1343 = vsub.f32 1.0, %v1342
        %v1344 = vmul.f32 %v1341, %v1343
        %v1345 = vadd.f32 %v1341, %v1344
        %vm1346 = vweird.f32 %v1331
        %vm1347 = vweird.f32 %v1341
        %vm1348 = vmor %vm1346, %vm1347
        %v1349 = vsel %vm1348, %v1341, %v1345
        %v1350 = vand.u32 2147483647, %v1331
        %vm1351 = vcmp.eq.f32.partialorder %v1350, 8.507059e+37
        %v1352 = vand.u32 %v1331, 2147483648
        %v1353 = vor.u32 1.1754944e-38, %v1352
        %v1354 = vsel %vm1351, %v1353, %v1349
        %v1355 = vmul.f32 %v1322, %v1354
        %v1356 = vrcp.pop %v1334
        %v1357 = vmul.f32 %v1334, %v1356
        %v1358 = vsub.f32 1.0, %v1357
        %v1359 = vmul.f32 %v1356, %v1358
        %v1360 = vadd.f32 %v1356, %v1359
        %vm1361 = vweird.f32 %v1334
        %vm1362 = vweird.f32 %v1356
        %vm1363 = vmor %vm1361, %vm1362
        %v1364 = vsel %vm1363, %v1356, %v1360
        %v1365 = vand.u32 2147483647, %v1334
        %vm1366 = vcmp.eq.f32.partialorder %v1365, 8.507059e+37
        %v1367 = vand.u32 %v1334, 2147483648
        %v1368 = vor.u32 1.1754944e-38, %v1367
        %v1369 = vsel %vm1366, %v1368, %v1364
        %v1370 = vmul.f32 %v1324, %v1369
        %v1371 = vrcp.pop %v1337
        %v1372 = vmul.f32 %v1337, %v1371
        %v1373 = vsub.f32 1.0, %v1372
        %v1374 = vmul.f32 %v1371, %v1373
        %v1375 = vadd.f32 %v1371, %v1374
        %vm1376 = vweird.f32 %v1337
        %vm1377 = vweird.f32 %v1371
        %vm1378 = vmor %vm1376, %vm1377
        %v1379 = vsel %vm1378, %v1371, %v1375
        %v1380 = vand.u32 2147483647, %v1337
        %vm1381 = vcmp.eq.f32.partialorder %v1380, 8.507059e+37
        %v1382 = vand.u32 %v1337, 2147483648
        %v1383 = vor.u32 1.1754944e-38, %v1382
        %v1384 = vsel %vm1381, %v1383, %v1379
        %v1385 = vmul.f32 %v1326, %v1384
        %v1386 = vrcp.pop %v1340
        %v1387 = vmul.f32 %v1340, %v1386
        %v1388 = vsub.f32 1.0, %v1387
        %v1389 = vmul.f32 %v1386, %v1388
        %v1390 = vadd.f32 %v1386, %v1389
        %vm1391 = vweird.f32 %v1340
        %vm1392 = vweird.f32 %v1386
        %vm1393 = vmor %vm1391, %vm1392
        %v1394 = vsel %vm1393, %v1386, %v1390
        %v1395 = vand.u32 2147483647, %v1340
        %vm1396 = vcmp.eq.f32.partialorder %v1395, 8.507059e+37
        %v1397 = vand.u32 %v1340, 2147483648
        %v1398 = vor.u32 1.1754944e-38, %v1397
        %v1399 = vsel %vm1396, %v1398, %v1394
        %v1400 = vmul.f32 %v1328, %v1399
        %v1401 = vpack.c.bf16 %v1370, %v1355
        %v1402 = vpack.c.bf16 %v1400, %v1385
        %v1407 = vunpack.c.l.b16 %v1251
        %v1408 = vunpack.c.l.b16 %v1254
        %v1409 = vunpack.c.l.b16 %v1257
        %v1410 = vunpack.c.l.b16 %v1260
        %v1411 = vpack.c.b16 %v1408, %v1407
        %v1412 = vpack.c.b16 %v1410, %v1409
        %v1416 = vsel %vm1304, %v1401, 0
        %v1419 = vsel %vm1304, %v1402, 0
        %1421 = vmatpush.bf16.msra.mxu0 0
        %1422 = vmatpush.bf16.msra.mxu0 0
        %1423 = vmatpush.bf16.msra.mxu0 0
        %1424 = vmatpush.bf16.msra.mxu0 0
        %1425 = vmatpush.bf16.msra.mxu0 0
        %1426 = vmatpush.bf16.msra.mxu0 0
        %1427 = vmatpush.bf16.msra.mxu0 %v1412
        %1428 = vmatpush.bf16.msra.mxu0 %v1411
        %1429 = vmatmul.bf16.gmra.mxu0 %v1416
        %v1430 = vpop.f32.mrf.mxu0
        %v1431 = vadd.f32 0.0, %v1430
        %v1432 = vpop.f32.mrf.mxu0
        %v1433 = vadd.f32 0.0, %v1432
        %1434 = vmatmul.bf16.gmra.mxu0 %v1419
        %v1435 = vpop.f32.mrf.mxu0
        %v1436 = vadd.f32 0.0, %v1435
        %v1437 = vpop.f32.mrf.mxu0
        %v1438 = vadd.f32 0.0, %v1437
        %1439 = vdwg.mxu0
        %v1440 = vunpack.c.h.b16 %v1249
        %v1441 = vunpack.c.h.b16 %v1252
        %v1442 = vunpack.c.h.b16 %v1255
        %v1443 = vunpack.c.h.b16 %v1258
        %v1444 = vpack.c.b16 %v1441, %v1440
        %v1445 = vpack.c.b16 %v1443, %v1442
        %v1448 = vunpack.c.h.b16 %v1250
        %v1449 = vunpack.c.h.b16 %v1253
        %v1450 = vunpack.c.h.b16 %v1256
        %v1451 = vunpack.c.h.b16 %v1259
        %v1452 = vpack.c.b16 %v1449, %v1448
        %v1453 = vpack.c.b16 %v1451, %v1450
        %1456 = vmatpush.bf16.xpose.msra.mxu0 0
        %1457 = vmatpush.bf16.xpose.msra.mxu0 0
        %1458 = vmatpush.bf16.xpose.msra.mxu0 0
        %1459 = vmatpush.bf16.xpose.msra.mxu0 0
        %1460 = vmatpush.bf16.xpose.msra.mxu0 0
        %1461 = vmatpush.bf16.xpose.msra.mxu0 0
        %1462 = vmatpush.bf16.xpose.msra.mxu0 %v1453
        %1463 = vmatpush.bf16.xpose.msra.mxu0 %v1452
        %1464 = vmatmul.bf16.gmra.mxu0 %v1444
        %v1465 = vpop.f32.mrf.mxu0
        %v1466 = vadd.f32 %v827, %v1465
        %v1467 = vpop.f32.mrf.mxu0
        %v1468 = vadd.f32 %v828, %v1467
        %1469 = vmatmul.bf16.gmra.mxu0 %v1445
        %v1470 = vpop.f32.mrf.mxu0
        %v1471 = vadd.f32 %v829, %v1470
        %v1472 = vpop.f32.mrf.mxu0
        %v1473 = vadd.f32 %v830, %v1472
        %1474 = vdwg.mxu0
        %v1475 = vsel %vm1304, %v1466, -inf
        %1476 = vmax.xlane.f32.xlu0 %v1475
        %v1477 = vpop.xlane.xlu0 %1476
        %v1478 = vsel %vm1304, %v1468, -inf
        %1479 = vmax.xlane.f32.xlu0 %v1478
        %v1480 = vpop.xlane.xlu0 %1479
        %v1481 = vsel %vm1304, %v1471, -inf
        %1482 = vmax.xlane.f32.xlu0 %v1481
        %v1483 = vpop.xlane.xlu0 %1482
        %v1484 = vsel %vm1304, %v1473, -inf
        %1485 = vmax.xlane.f32.xlu0 %v1484
        %v1486 = vpop.xlane.xlu0 %1485
        %v1487 = vsub.f32 %v1466, %v1477
        %v1488 = vsub.f32 %v1468, %v1480
        %v1489 = vsub.f32 %v1471, %v1483
        %v1490 = vsub.f32 %v1473, %v1486
        %v1491 = vmul.f32 %v1487, 1.442695
        %v1492 = vpow.pop %v1491
        %v1493 = vmul.f32 %v1488, 1.442695
        %v1494 = vpow.pop %v1493
        %v1495 = vmul.f32 %v1489, 1.442695
        %v1496 = vpow.pop %v1495
        %v1497 = vmul.f32 %v1490, 1.442695
        %v1498 = vpow.pop %v1497
        %v1499 = vsel %vm1304, %v1492, 0.0
        %1500 = vadd.xlane.f32.xlu0 %v1499
        %v1501 = vpop.xlane.xlu0 %1500
        %v1502 = vsel %vm1304, %v1494, 0.0
        %1503 = vadd.xlane.f32.xlu0 %v1502
        %v1504 = vpop.xlane.xlu0 %1503
        %v1505 = vsel %vm1304, %v1496, 0.0
        %1506 = vadd.xlane.f32.xlu0 %v1505
        %v1507 = vpop.xlane.xlu0 %1506
        %v1508 = vsel %vm1304, %v1498, 0.0
        %1509 = vadd.xlane.f32.xlu0 %v1508
        %v1510 = vpop.xlane.xlu0 %1509
        %v1511 = vrcp.pop %v1501
        %v1512 = vmul.f32 %v1501, %v1511
        %v1513 = vsub.f32 1.0, %v1512
        %v1514 = vmul.f32 %v1511, %v1513
        %v1515 = vadd.f32 %v1511, %v1514
        %vm1516 = vweird.f32 %v1501
        %vm1517 = vweird.f32 %v1511
        %vm1518 = vmor %vm1516, %vm1517
        %v1519 = vsel %vm1518, %v1511, %v1515
        %v1520 = vand.u32 2147483647, %v1501
        %vm1521 = vcmp.eq.f32.partialorder %v1520, 8.507059e+37
        %v1522 = vand.u32 %v1501, 2147483648
        %v1523 = vor.u32 1.1754944e-38, %v1522
        %v1524 = vsel %vm1521, %v1523, %v1519
        %v1525 = vmul.f32 %v1492, %v1524
        %v1526 = vrcp.pop %v1504
        %v1527 = vmul.f32 %v1504, %v1526
        %v1528 = vsub.f32 1.0, %v1527
        %v1529 = vmul.f32 %v1526, %v1528
        %v1530 = vadd.f32 %v1526, %v1529
        %vm1531 = vweird.f32 %v1504
        %vm1532 = vweird.f32 %v1526
        %vm1533 = vmor %vm1531, %vm1532
        %v1534 = vsel %vm1533, %v1526, %v1530
        %v1535 = vand.u32 2147483647, %v1504
        %vm1536 = vcmp.eq.f32.partialorder %v1535, 8.507059e+37
        %v1537 = vand.u32 %v1504, 2147483648
        %v1538 = vor.u32 1.1754944e-38, %v1537
        %v1539 = vsel %vm1536, %v1538, %v1534
        %v1540 = vmul.f32 %v1494, %v1539
        %v1541 = vrcp.pop %v1507
        %v1542 = vmul.f32 %v1507, %v1541
        %v1543 = vsub.f32 1.0, %v1542
        %v1544 = vmul.f32 %v1541, %v1543
        %v1545 = vadd.f32 %v1541, %v1544
        %vm1546 = vweird.f32 %v1507
        %vm1547 = vweird.f32 %v1541
        %vm1548 = vmor %vm1546, %vm1547
        %v1549 = vsel %vm1548, %v1541, %v1545
        %v1550 = vand.u32 2147483647, %v1507
        %vm1551 = vcmp.eq.f32.partialorder %v1550, 8.507059e+37
        %v1552 = vand.u32 %v1507, 2147483648
        %v1553 = vor.u32 1.1754944e-38, %v1552
        %v1554 = vsel %vm1551, %v1553, %v1549
        %v1555 = vmul.f32 %v1496, %v1554
        %v1556 = vrcp.pop %v1510
        %v1557 = vmul.f32 %v1510, %v1556
        %v1558 = vsub.f32 1.0, %v1557
        %v1559 = vmul.f32 %v1556, %v1558
        %v1560 = vadd.f32 %v1556, %v1559
        %vm1561 = vweird.f32 %v1510
        %vm1562 = vweird.f32 %v1556
        %vm1563 = vmor %vm1561, %vm1562
        %v1564 = vsel %vm1563, %v1556, %v1560
        %v1565 = vand.u32 2147483647, %v1510
        %vm1566 = vcmp.eq.f32.partialorder %v1565, 8.507059e+37
        %v1567 = vand.u32 %v1510, 2147483648
        %v1568 = vor.u32 1.1754944e-38, %v1567
        %v1569 = vsel %vm1566, %v1568, %v1564
        %v1570 = vmul.f32 %v1498, %v1569
        %v1571 = vpack.c.bf16 %v1540, %v1525
        %v1572 = vpack.c.bf16 %v1570, %v1555
        %v1573 = vunpack.c.h.b16 %v1251
        %v1574 = vunpack.c.h.b16 %v1254
        %v1575 = vunpack.c.h.b16 %v1257
        %v1576 = vunpack.c.h.b16 %v1260
        %v1577 = vpack.c.b16 %v1574, %v1573
        %v1578 = vpack.c.b16 %v1576, %v1575
        %v1582 = vsel %vm1304, %v1571, 0
        %v1585 = vsel %vm1304, %v1572, 0
        %1587 = vmatpush.bf16.msra.mxu0 0
        %1588 = vmatpush.bf16.msra.mxu0 0
        %1589 = vmatpush.bf16.msra.mxu0 0
        %1590 = vmatpush.bf16.msra.mxu0 0
        %1591 = vmatpush.bf16.msra.mxu0 0
        %1592 = vmatpush.bf16.msra.mxu0 0
        %1593 = vmatpush.bf16.msra.mxu0 %v1578
        %1594 = vmatpush.bf16.msra.mxu0 %v1577
        %1595 = vmatmul.bf16.gmra.mxu0 %v1582
        %v1596 = vpop.f32.mrf.mxu0
        %v1597 = vadd.f32 0.0, %v1596
        %v1598 = vpop.f32.mrf.mxu0
        %v1599 = vadd.f32 0.0, %v1598
        %1600 = vmatmul.bf16.gmra.mxu0 %v1585
        %v1601 = vpop.f32.mrf.mxu0
        %v1602 = vadd.f32 0.0, %v1601
        %v1603 = vpop.f32.mrf.mxu0
        %v1604 = vadd.f32 0.0, %v1603
        %1605 = vdwg.mxu0
        %v1606 = vpack.c.bf16 %v1433, %v1431
        %v1607 = vpack.c.bf16 %v1599, %v1597
        %v1608 = vpack.c.bf16 %v1438, %v1436
        %v1609 = vpack.c.bf16 %v1604, %v1602
        %v1610 = vld [vmem:[%s674] sm:$0xf]
        %v1611 = vld [vmem:[%s674 + $0x4] sm:$0xf]
        %v1612 = vld [vmem:[%s674 + $0x8] sm:$0xf]
        %v1613 = vld [vmem:[%s674 + $0xc] sm:$0xf]
        %v1614 = vld [vmem:[%s674 + $0x10] sm:$0xf]
        %v1615 = vld [vmem:[%s674 + $0x14] sm:$0xf]
        %v1616 = vld [vmem:[%s674 + $0x18] sm:$0xf]
        %v1617 = vld [vmem:[%s674 + $0x1c] sm:$0xf]
        %v1618 = vld [vmem:[%s674 + $0x20] sm:$0xf]
        %v1619 = vld [vmem:[%s674 + $0x24] sm:$0xf]
        %v1620 = vld [vmem:[%s674 + $0x28] sm:$0xf]
        %v1621 = vld [vmem:[%s674 + $0x2c] sm:$0xf]
        %v1622 = vld [vmem:[%s674 + $0x30] sm:$0xf]
        %v1623 = vld [vmem:[%s674 + $0x34] sm:$0xf]
        %v1624 = vld [vmem:[%s674 + $0x38] sm:$0xf]
        %v1625 = vld [vmem:[%s674 + $0x3c] sm:$0xf]
        %v1626 = vld [vmem:[%s674 + $0x40] sm:$0xf]
        %v1627 = vld [vmem:[%s674 + $0x44] sm:$0xf]
        %v1628 = vld [vmem:[%s674 + $0x48] sm:$0xf]
        %v1629 = vld [vmem:[%s674 + $0x4c] sm:$0xf]
        %v1630 = vld [vmem:[%s674 + $0x50] sm:$0xf]
        %v1631 = vld [vmem:[%s674 + $0x54] sm:$0xf]
        %v1632 = vld [vmem:[%s674 + $0x58] sm:$0xf]
        %v1633 = vld [vmem:[%s674 + $0x5c] sm:$0xf]
        %v1634 = vld [vmem:[%s674 + $0x60] sm:$0xf]
        %v1635 = vld [vmem:[%s674 + $0x64] sm:$0xf]
        %v1636 = vld [vmem:[%s674 + $0x68] sm:$0xf]
        %v1637 = vld [vmem:[%s674 + $0x6c] sm:$0xf]
        %v1638 = vld [vmem:[%s674 + $0x70] sm:$0xf]
        %v1639 = vld [vmem:[%s674 + $0x74] sm:$0xf]
        %v1640 = vld [vmem:[%s674 + $0x78] sm:$0xf]
        %v1641 = vld [vmem:[%s674 + $0x7c] sm:$0xf]
        %v1642 = vld [vmem:[%s677] sm:$0x1]
        %v1644 = vperm.slane %v1642, 0
        %v1678 = vunpack.c.l.b16 %v1610
        %v1679 = vunpack.c.l.b16 %v1611
        %v1680 = vunpack.c.l.b16 %v1612
        %v1681 = vunpack.c.l.b16 %v1613
        %v1682 = vunpack.c.l.b16 %v1614
        %v1683 = vunpack.c.l.b16 %v1615
        %v1684 = vunpack.c.l.b16 %v1616
        %v1685 = vunpack.c.l.b16 %v1617
        %v1686 = vunpack.c.l.b16 %v1618
        %v1687 = vunpack.c.l.b16 %v1619
        %v1688 = vunpack.c.l.b16 %v1620
        %v1689 = vunpack.c.l.b16 %v1621
        %v1690 = vunpack.c.l.b16 %v1622
        %v1691 = vunpack.c.l.b16 %v1623
        %v1692 = vunpack.c.l.b16 %v1624
        %v1693 = vunpack.c.l.b16 %v1625
        %v1694 = vunpack.c.l.b16 %v1626
        %v1695 = vunpack.c.l.b16 %v1627
        %v1696 = vunpack.c.l.b16 %v1628
        %v1697 = vunpack.c.l.b16 %v1629
        %v1698 = vunpack.c.l.b16 %v1630
        %v1699 = vunpack.c.l.b16 %v1631
        %v1700 = vunpack.c.l.b16 %v1632
        %v1701 = vunpack.c.l.b16 %v1633
        %v1702 = vunpack.c.l.b16 %v1634
        %v1703 = vunpack.c.l.b16 %v1635
        %v1704 = vunpack.c.l.b16 %v1636
        %v1705 = vunpack.c.l.b16 %v1637
        %v1706 = vunpack.c.l.b16 %v1638
        %v1707 = vunpack.c.l.b16 %v1639
        %v1708 = vunpack.c.l.b16 %v1640
        %v1709 = vunpack.c.l.b16 %v1641
        %v1710 = vpack.c.b16 %v1679, %v1678
        %v1711 = vpack.c.b16 %v1681, %v1680
        %v1712 = vpack.c.b16 %v1683, %v1682
        %v1713 = vpack.c.b16 %v1685, %v1684
        %v1714 = vpack.c.b16 %v1687, %v1686
        %v1715 = vpack.c.b16 %v1689, %v1688
        %v1716 = vpack.c.b16 %v1691, %v1690
        %v1717 = vpack.c.b16 %v1693, %v1692
        %v1718 = vpack.c.b16 %v1695, %v1694
        %v1719 = vpack.c.b16 %v1697, %v1696
        %v1720 = vpack.c.b16 %v1699, %v1698
        %v1721 = vpack.c.b16 %v1701, %v1700
        %v1722 = vpack.c.b16 %v1703, %v1702
        %v1723 = vpack.c.b16 %v1705, %v1704
        %v1724 = vpack.c.b16 %v1707, %v1706
        %v1725 = vpack.c.b16 %v1709, %v1708
        %1742 = vmatpush.bf16.msra.mxu0 %v1717
        %1743 = vmatpush.bf16.msra.mxu0 %v1716
        %1744 = vmatpush.bf16.msra.mxu0 %v1715
        %1745 = vmatpush.bf16.msra.mxu0 %v1714
        %1746 = vmatpush.bf16.msra.mxu0 %v1713
        %1747 = vmatpush.bf16.msra.mxu0 %v1712
        %1748 = vmatpush.bf16.msra.mxu0 %v1711
        %1749 = vmatpush.bf16.msra.mxu0 %v1710
        %1750 = vmatmul.bf16.gmra.mxu0 %v1606
        %v1751 = vpop.f32.mrf.mxu0
        %v1752 = vadd.f32 %v1644, %v1751
        %v1753 = vpop.f32.mrf.mxu0
        %v1754 = vadd.f32 %v1644, %v1753
        %1755 = vmatmul.bf16.gmra.mxu0 %v1608
        %v1756 = vpop.f32.mrf.mxu0
        %v1757 = vadd.f32 %v1644, %v1756
        %v1758 = vpop.f32.mrf.mxu0
        %v1759 = vadd.f32 %v1644, %v1758
        %1760 = vdwg.mxu0
        %1761 = vmatpush.bf16.msra.mxu0 %v1725
        %1762 = vmatpush.bf16.msra.mxu0 %v1724
        %1763 = vmatpush.bf16.msra.mxu0 %v1723
        %1764 = vmatpush.bf16.msra.mxu0 %v1722
        %1765 = vmatpush.bf16.msra.mxu0 %v1721
        %1766 = vmatpush.bf16.msra.mxu0 %v1720
        %1767 = vmatpush.bf16.msra.mxu0 %v1719
        %1768 = vmatpush.bf16.msra.mxu0 %v1718
        %1769 = vmatmul.bf16.gmra.mxu0 %v1607
        %v1770 = vpop.f32.mrf.mxu0
        %v1771 = vadd.f32 %v1752, %v1770
        %v1772 = vpop.f32.mrf.mxu0
        %v1773 = vadd.f32 %v1754, %v1772
        %1774 = vmatmul.bf16.gmra.mxu0 %v1609
        %v1775 = vpop.f32.mrf.mxu0
        %v1776 = vadd.f32 %v1757, %v1775
        %v1777 = vpop.f32.mrf.mxu0
        %v1778 = vadd.f32 %v1759, %v1777
        %1779 = vdwg.mxu0
        %v1780 = vadd.f32 %v1771, %v823
        %v1781 = vadd.f32 %v1773, %v824
        %v1782 = vadd.f32 %v1776, %v825
        %v1783 = vadd.f32 %v1778, %v826
        %v1784 = vld [vmem:[%s680] sm:$0x1]
        %v1785 = vld [vmem:[%s683] sm:$0x1]
        %1786 = vadd.xlane.f32.xlu0 %v1780
        %v1787 = vpop.xlane.xlu0 %1786
        %1788 = vadd.xlane.f32.xlu0 %v1781
        %v1789 = vpop.xlane.xlu0 %1788
        %1790 = vadd.xlane.f32.xlu0 %v1782
        %v1791 = vpop.xlane.xlu0 %1790
        %1792 = vadd.xlane.f32.xlu0 %v1783
        %v1793 = vpop.xlane.xlu0 %1792
        %v1794 = vrcp.pop 128.0
        %v1795 = vmul.f32 128.0, %v1794
        %v1796 = vsub.f32 1.0, %v1795
        %v1797 = vmul.f32 %v1794, %v1796
        %v1798 = vadd.f32 %v1794, %v1797
        %vm1799 = vweird.f32 %v1794
        %v1800 = vsel %vm1799, %v1794, %v1798
        %v1801 = vmul.f32 %v1787, %v1800
        %v1802 = vmul.f32 %v1789, %v1800
        %v1803 = vmul.f32 %v1791, %v1800
        %v1804 = vmul.f32 %v1793, %v1800
        %v1805 = vsub.f32 %v1780, %v1801
        %v1806 = vsub.f32 %v1781, %v1802
        %v1807 = vsub.f32 %v1782, %v1803
        %v1808 = vsub.f32 %v1783, %v1804
        %v1809 = vmul.f32 %v1805, %v1805
        %v1810 = vmul.f32 %v1806, %v1806
        %v1811 = vmul.f32 %v1807, %v1807
        %v1812 = vmul.f32 %v1808, %v1808
        %1813 = vadd.xlane.f32.xlu0 %v1809
        %v1814 = vpop.xlane.xlu0 %1813
        %1815 = vadd.xlane.f32.xlu0 %v1810
        %v1816 = vpop.xlane.xlu0 %1815
        %1817 = vadd.xlane.f32.xlu0 %v1811
        %v1818 = vpop.xlane.xlu0 %1817
        %1819 = vadd.xlane.f32.xlu0 %v1812
        %v1820 = vpop.xlane.xlu0 %1819
        %v1821 = vmul.f32 %v1814, %v1800
        %v1822 = vmul.f32 %v1816, %v1800
        %v1823 = vmul.f32 %v1818, %v1800
        %v1824 = vmul.f32 %v1820, %v1800
        %v1825 = vadd.f32 %v1821, 1e-12
        %v1826 = vadd.f32 %v1822, 1e-12
        %v1827 = vadd.f32 %v1823, 1e-12
        %v1828 = vadd.f32 %v1824, 1e-12
        %v1829 = vrsqrt.pop %v1825
        %v1830 = vmul.f32 %v1829, %v1825
        %v1831 = vmul.f32 %v1830, %v1829
        %v1832 = vmul.f32 0.5, %v1831
        %v1833 = vsub.f32 1.5, %v1832
        %v1834 = vmul.f32 %v1829, %v1833
        %vm1835 = vweird.f32 %v1825
        %vm1836 = vweird.f32 %v1829
        %vm1837 = vmor %vm1835, %vm1836
        %v1838 = vsel %vm1837, %v1829, %v1834
        %v1839 = vrsqrt.pop %v1826
        %v1840 = vmul.f32 %v1839, %v1826
        %v1841 = vmul.f32 %v1840, %v1839
        %v1842 = vmul.f32 0.5, %v1841
        %v1843 = vsub.f32 1.5, %v1842
        %v1844 = vmul.f32 %v1839, %v1843
        %vm1845 = vweird.f32 %v1826
        %vm1846 = vweird.f32 %v1839
        %vm1847 = vmor %vm1845, %vm1846
        %v1848 = vsel %vm1847, %v1839, %v1844
        %v1849 = vrsqrt.pop %v1827
        %v1850 = vmul.f32 %v1849, %v1827
        %v1851 = vmul.f32 %v1850, %v1849
        %v1852 = vmul.f32 0.5, %v1851
        %v1853 = vsub.f32 1.5, %v1852
        %v1854 = vmul.f32 %v1849, %v1853
        %vm1855 = vweird.f32 %v1827
        %vm1856 = vweird.f32 %v1849
        %vm1857 = vmor %vm1855, %vm1856
        %v1858 = vsel %vm1857, %v1849, %v1854
        %v1859 = vrsqrt.pop %v1828
        %v1860 = vmul.f32 %v1859, %v1828
        %v1861 = vmul.f32 %v1860, %v1859
        %v1862 = vmul.f32 0.5, %v1861
        %v1863 = vsub.f32 1.5, %v1862
        %v1864 = vmul.f32 %v1859, %v1863
        %vm1865 = vweird.f32 %v1828
        %vm1866 = vweird.f32 %v1859
        %vm1867 = vmor %vm1865, %vm1866
        %v1868 = vsel %vm1867, %v1859, %v1864
        %v1869 = vmul.f32 %v1805, %v1838
        %v1870 = vmul.f32 %v1806, %v1848
        %v1871 = vmul.f32 %v1807, %v1858
        %v1872 = vmul.f32 %v1808, %v1868
        %v1874 = vperm.slane %v1784, 0
        %v1876 = vmul.f32 %v1869, %v1874
        %v1877 = vmul.f32 %v1870, %v1874
        %v1878 = vmul.f32 %v1871, %v1874
        %v1879 = vmul.f32 %v1872, %v1874
        %v1881 = vperm.slane %v1785, 0
        %v1883 = vadd.f32 %v1876, %v1881
        %v1884 = vadd.f32 %v1877, %v1881
        %v1885 = vadd.f32 %v1878, %v1881
        %v1886 = vadd.f32 %v1879, %v1881
        %v1887 = vpack.c.bf16 %v1884, %v1883
        %v1888 = vpack.c.bf16 %v1886, %v1885
        %v1889 = vld [vmem:[%s688] sm:$0xff]
        %v1890 = vld [vmem:[%s688 + $0x8] sm:$0xff]
        %v1891 = vld [vmem:[%s688 + $0x10] sm:$0xff]
        %v1892 = vld [vmem:[%s688 + $0x18] sm:$0xff]
        %v1893 = vld [vmem:[%s688 + $0x20] sm:$0xff]
        %v1894 = vld [vmem:[%s688 + $0x28] sm:$0xff]
        %v1895 = vld [vmem:[%s688 + $0x30] sm:$0xff]
        %v1896 = vld [vmem:[%s688 + $0x38] sm:$0xff]
        %v1897 = vld [vmem:[%s688 + $0x40] sm:$0xff]
        %v1898 = vld [vmem:[%s688 + $0x48] sm:$0xff]
        %v1899 = vld [vmem:[%s688 + $0x50] sm:$0xff]
        %v1900 = vld [vmem:[%s688 + $0x58] sm:$0xff]
        %v1901 = vld [vmem:[%s688 + $0x60] sm:$0xff]
        %v1902 = vld [vmem:[%s688 + $0x68] sm:$0xff]
        %v1903 = vld [vmem:[%s688 + $0x70] sm:$0xff]
        %v1904 = vld [vmem:[%s688 + $0x78] sm:$0xff]
        %v1905 = vld [vmem:[%s692] sm:$0x3]
        %v1907 = vperm.slane %v1905, 0
        %v1908 = vperm.slane %v1905, 1
        %v1927 = vunpack.c.l.b16 %v1889
        %v1928 = vunpack.c.h.b16 %v1889
        %v1929 = vunpack.c.l.b16 %v1890
        %v1930 = vunpack.c.h.b16 %v1890
        %v1931 = vunpack.c.l.b16 %v1891
        %v1932 = vunpack.c.h.b16 %v1891
        %v1933 = vunpack.c.l.b16 %v1892
        %v1934 = vunpack.c.h.b16 %v1892
        %v1935 = vunpack.c.l.b16 %v1893
        %v1936 = vunpack.c.h.b16 %v1893
        %v1937 = vunpack.c.l.b16 %v1894
        %v1938 = vunpack.c.h.b16 %v1894
        %v1939 = vunpack.c.l.b16 %v1895
        %v1940 = vunpack.c.h.b16 %v1895
        %v1941 = vunpack.c.l.b16 %v1896
        %v1942 = vunpack.c.h.b16 %v1896
        %v1943 = vunpack.c.l.b16 %v1897
        %v1944 = vunpack.c.h.b16 %v1897
        %v1945 = vunpack.c.l.b16 %v1898
        %v1946 = vunpack.c.h.b16 %v1898
        %v1947 = vunpack.c.l.b16 %v1899
        %v1948 = vunpack.c.h.b16 %v1899
        %v1949 = vunpack.c.l.b16 %v1900
        %v1950 = vunpack.c.h.b16 %v1900
        %v1951 = vunpack.c.l.b16 %v1901
        %v1952 = vunpack.c.h.b16 %v1901
        %v1953 = vunpack.c.l.b16 %v1902
        %v1954 = vunpack.c.h.b16 %v1902
        %v1955 = vunpack.c.l.b16 %v1903
        %v1956 = vunpack.c.h.b16 %v1903
        %v1957 = vunpack.c.l.b16 %v1904
        %v1958 = vunpack.c.h.b16 %v1904
        %v1959 = vpack.c.b16 %v1929, %v1927
        %v1960 = vpack.c.b16 %v1930, %v1928
        %v1961 = vpack.c.b16 %v1933, %v1931
        %v1962 = vpack.c.b16 %v1934, %v1932
        %v1963 = vpack.c.b16 %v1937, %v1935
        %v1964 = vpack.c.b16 %v1938, %v1936
        %v1965 = vpack.c.b16 %v1941, %v1939
        %v1966 = vpack.c.b16 %v1942, %v1940
        %v1967 = vpack.c.b16 %v1945, %v1943
        %v1968 = vpack.c.b16 %v1946, %v1944
        %v1969 = vpack.c.b16 %v1949, %v1947
        %v1970 = vpack.c.b16 %v1950, %v1948
        %v1971 = vpack.c.b16 %v1953, %v1951
        %v1972 = vpack.c.b16 %v1954, %v1952
        %v1973 = vpack.c.b16 %v1957, %v1955
        %v1974 = vpack.c.b16 %v1958, %v1956
        %1991 = vmatpush.bf16.msra.mxu0 %v1973
        %1992 = vmatpush.bf16.msra.mxu0 %v1971
        %1993 = vmatpush.bf16.msra.mxu0 %v1969
        %1994 = vmatpush.bf16.msra.mxu0 %v1967
        %1995 = vmatpush.bf16.msra.mxu0 %v1965
        %1996 = vmatpush.bf16.msra.mxu0 %v1963
        %1997 = vmatpush.bf16.msra.mxu0 %v1961
        %1998 = vmatpush.bf16.msra.mxu0 %v1959
        %1999 = vmatmul.bf16.gmra.mxu0 %v1887
        %v2000 = vpop.f32.mrf.mxu0
        %v2001 = vadd.f32 %v1907, %v2000
        %v2002 = vpop.f32.mrf.mxu0
        %v2003 = vadd.f32 %v1907, %v2002
        %2004 = vmatmul.bf16.gmra.mxu0 %v1888
        %v2005 = vpop.f32.mrf.mxu0
        %v2006 = vadd.f32 %v1907, %v2005
        %v2007 = vpop.f32.mrf.mxu0
        %v2008 = vadd.f32 %v1907, %v2007
        %2009 = vdwg.mxu0
        %2010 = vmatpush.bf16.msra.mxu0 %v1974
        %2011 = vmatpush.bf16.msra.mxu0 %v1972
        %2012 = vmatpush.bf16.msra.mxu0 %v1970
        %2013 = vmatpush.bf16.msra.mxu0 %v1968
        %2014 = vmatpush.bf16.msra.mxu0 %v1966
        %2015 = vmatpush.bf16.msra.mxu0 %v1964
        %2016 = vmatpush.bf16.msra.mxu0 %v1962
        %2017 = vmatpush.bf16.msra.mxu0 %v1960
        %2018 = vmatmul.bf16.gmra.mxu0 %v1887
        %v2019 = vpop.f32.mrf.mxu0
        %v2020 = vadd.f32 %v1908, %v2019
        %v2021 = vpop.f32.mrf.mxu0
        %v2022 = vadd.f32 %v1908, %v2021
        %2023 = vmatmul.bf16.gmra.mxu0 %v1888
        %v2024 = vpop.f32.mrf.mxu0
        %v2025 = vadd.f32 %v1908, %v2024
        %v2026 = vpop.f32.mrf.mxu0
        %v2027 = vadd.f32 %v1908, %v2026
        %2028 = vdwg.mxu0
        %v2029 = vmul.f32 %v2001, 0.5
        %v2030 = vmul.f32 %v2020, 0.5
        %v2031 = vmul.f32 %v2003, 0.5
        %v2032 = vmul.f32 %v2022, 0.5
        %v2033 = vmul.f32 %v2006, 0.5
        %v2034 = vmul.f32 %v2025, 0.5
        %v2035 = vmul.f32 %v2008, 0.5
        %v2036 = vmul.f32 %v2027, 0.5
        %v2037 = vmul.f32 %v2001, 0.044715
        %v2038 = vmul.f32 %v2020, 0.044715
        %v2039 = vmul.f32 %v2003, 0.044715
        %v2040 = vmul.f32 %v2022, 0.044715
        %v2041 = vmul.f32 %v2006, 0.044715
        %v2042 = vmul.f32 %v2025, 0.044715
        %v2043 = vmul.f32 %v2008, 0.044715
        %v2044 = vmul.f32 %v2027, 0.044715
        %v2045 = vmul.f32 %v2037, %v2001
        %v2046 = vmul.f32 %v2038, %v2020
        %v2047 = vmul.f32 %v2039, %v2003
        %v2048 = vmul.f32 %v2040, %v2022
        %v2049 = vmul.f32 %v2041, %v2006
        %v2050 = vmul.f32 %v2042, %v2025
        %v2051 = vmul.f32 %v2043, %v2008
        %v2052 = vmul.f32 %v2044, %v2027
        %v2053 = vmul.f32 %v2045, %v2001
        %v2054 = vmul.f32 %v2046, %v2020
        %v2055 = vmul.f32 %v2047, %v2003
        %v2056 = vmul.f32 %v2048, %v2022
        %v2057 = vmul.f32 %v2049, %v2006
        %v2058 = vmul.f32 %v2050, %v2025
        %v2059 = vmul.f32 %v2051, %v2008
        %v2060 = vmul.f32 %v2052, %v2027
        %v2061 = vadd.f32 %v2001, %v2053
        %v2062 = vadd.f32 %v2020, %v2054
        %v2063 = vadd.f32 %v2003, %v2055
        %v2064 = vadd.f32 %v2022, %v2056
        %v2065 = vadd.f32 %v2006, %v2057
        %v2066 = vadd.f32 %v2025, %v2058
        %v2067 = vadd.f32 %v2008, %v2059
        %v2068 = vadd.f32 %v2027, %v2060
        %v2069 = vmul.f32 %v2061, 0.7978846
        %v2070 = vmul.f32 %v2062, 0.7978846
        %v2071 = vmul.f32 %v2063, 0.7978846
        %v2072 = vmul.f32 %v2064, 0.7978846
        %v2073 = vmul.f32 %v2065, 0.7978846
        %v2074 = vmul.f32 %v2066, 0.7978846
        %v2075 = vmul.f32 %v2067, 0.7978846
        %v2076 = vmul.f32 %v2068, 0.7978846
        %v2077 = vtanh.pop %v2069
        %v2078 = vtanh.pop %v2070
        %v2079 = vtanh.pop %v2071
        %v2080 = vtanh.pop %v2072
        %v2081 = vtanh.pop %v2073
        %v2082 = vtanh.pop %v2074
        %v2083 = vtanh.pop %v2075
        %v2084 = vtanh.pop %v2076
        %v2085 = vadd.f32 %v2077, 1.0
        %v2086 = vadd.f32 %v2078, 1.0
        %v2087 = vadd.f32 %v2079, 1.0
        %v2088 = vadd.f32 %v2080, 1.0
        %v2089 = vadd.f32 %v2081, 1.0
        %v2090 = vadd.f32 %v2082, 1.0
        %v2091 = vadd.f32 %v2083, 1.0
        %v2092 = vadd.f32 %v2084, 1.0
        %v2093 = vmul.f32 %v2029, %v2085
        %v2094 = vmul.f32 %v2030, %v2086
        %v2095 = vmul.f32 %v2031, %v2087
        %v2096 = vmul.f32 %v2032, %v2088
        %v2097 = vmul.f32 %v2033, %v2089
        %v2098 = vmul.f32 %v2034, %v2090
        %v2099 = vmul.f32 %v2035, %v2091
        %v2100 = vmul.f32 %v2036, %v2092
        %v2101 = vpack.c.bf16 %v2095, %v2093
        %v2102 = vpack.c.bf16 %v2096, %v2094
        %v2103 = vpack.c.bf16 %v2099, %v2097
        %v2104 = vpack.c.bf16 %v2100, %v2098
        %v2105 = vld [vmem:[%s697] sm:$0xf]
        %v2106 = vld [vmem:[%s697 + $0x4] sm:$0xf]
        %v2107 = vld [vmem:[%s697 + $0x8] sm:$0xf]
        %v2108 = vld [vmem:[%s697 + $0xc] sm:$0xf]
        %v2109 = vld [vmem:[%s697 + $0x10] sm:$0xf]
        %v2110 = vld [vmem:[%s697 + $0x14] sm:$0xf]
        %v2111 = vld [vmem:[%s697 + $0x18] sm:$0xf]
        %v2112 = vld [vmem:[%s697 + $0x1c] sm:$0xf]
        %v2113 = vld [vmem:[%s697 + $0x20] sm:$0xf]
        %v2114 = vld [vmem:[%s697 + $0x24] sm:$0xf]
        %v2115 = vld [vmem:[%s697 + $0x28] sm:$0xf]
        %v2116 = vld [vmem:[%s697 + $0x2c] sm:$0xf]
        %v2117 = vld [vmem:[%s697 + $0x30] sm:$0xf]
        %v2118 = vld [vmem:[%s697 + $0x34] sm:$0xf]
        %v2119 = vld [vmem:[%s697 + $0x38] sm:$0xf]
        %v2120 = vld [vmem:[%s697 + $0x3c] sm:$0xf]
        %v2121 = vld [vmem:[%s697 + $0x40] sm:$0xf]
        %v2122 = vld [vmem:[%s697 + $0x44] sm:$0xf]
        %v2123 = vld [vmem:[%s697 + $0x48] sm:$0xf]
        %v2124 = vld [vmem:[%s697 + $0x4c] sm:$0xf]
        %v2125 = vld [vmem:[%s697 + $0x50] sm:$0xf]
        %v2126 = vld [vmem:[%s697 + $0x54] sm:$0xf]
        %v2127 = vld [vmem:[%s697 + $0x58] sm:$0xf]
        %v2128 = vld [vmem:[%s697 + $0x5c] sm:$0xf]
        %v2129 = vld [vmem:[%s697 + $0x60] sm:$0xf]
        %v2130 = vld [vmem:[%s697 + $0x64] sm:$0xf]
        %v2131 = vld [vmem:[%s697 + $0x68] sm:$0xf]
        %v2132 = vld [vmem:[%s697 + $0x6c] sm:$0xf]
        %v2133 = vld [vmem:[%s697 + $0x70] sm:$0xf]
        %v2134 = vld [vmem:[%s697 + $0x74] sm:$0xf]
        %v2135 = vld [vmem:[%s697 + $0x78] sm:$0xf]
        %v2136 = vld [vmem:[%s697 + $0x7c] sm:$0xf]
        %v2137 = vld [vmem:[%s700] sm:$0x1]
        %v2139 = vperm.slane %v2137, 0
        %v2173 = vunpack.c.l.b16 %v2105
        %v2174 = vunpack.c.l.b16 %v2106
        %v2175 = vunpack.c.l.b16 %v2107
        %v2176 = vunpack.c.l.b16 %v2108
        %v2177 = vunpack.c.l.b16 %v2109
        %v2178 = vunpack.c.l.b16 %v2110
        %v2179 = vunpack.c.l.b16 %v2111
        %v2180 = vunpack.c.l.b16 %v2112
        %v2181 = vunpack.c.l.b16 %v2113
        %v2182 = vunpack.c.l.b16 %v2114
        %v2183 = vunpack.c.l.b16 %v2115
        %v2184 = vunpack.c.l.b16 %v2116
        %v2185 = vunpack.c.l.b16 %v2117
        %v2186 = vunpack.c.l.b16 %v2118
        %v2187 = vunpack.c.l.b16 %v2119
        %v2188 = vunpack.c.l.b16 %v2120
        %v2189 = vunpack.c.l.b16 %v2121
        %v2190 = vunpack.c.l.b16 %v2122
        %v2191 = vunpack.c.l.b16 %v2123
        %v2192 = vunpack.c.l.b16 %v2124
        %v2193 = vunpack.c.l.b16 %v2125
        %v2194 = vunpack.c.l.b16 %v2126
        %v2195 = vunpack.c.l.b16 %v2127
        %v2196 = vunpack.c.l.b16 %v2128
        %v2197 = vunpack.c.l.b16 %v2129
        %v2198 = vunpack.c.l.b16 %v2130
        %v2199 = vunpack.c.l.b16 %v2131
        %v2200 = vunpack.c.l.b16 %v2132
        %v2201 = vunpack.c.l.b16 %v2133
        %v2202 = vunpack.c.l.b16 %v2134
        %v2203 = vunpack.c.l.b16 %v2135
        %v2204 = vunpack.c.l.b16 %v2136
        %v2205 = vpack.c.b16 %v2174, %v2173
        %v2206 = vpack.c.b16 %v2176, %v2175
        %v2207 = vpack.c.b16 %v2178, %v2177
        %v2208 = vpack.c.b16 %v2180, %v2179
        %v2209 = vpack.c.b16 %v2182, %v2181
        %v2210 = vpack.c.b16 %v2184, %v2183
        %v2211 = vpack.c.b16 %v2186, %v2185
        %v2212 = vpack.c.b16 %v2188, %v2187
        %v2213 = vpack.c.b16 %v2190, %v2189
        %v2214 = vpack.c.b16 %v2192, %v2191
        %v2215 = vpack.c.b16 %v2194, %v2193
        %v2216 = vpack.c.b16 %v2196, %v2195
        %v2217 = vpack.c.b16 %v2198, %v2197
        %v2218 = vpack.c.b16 %v2200, %v2199
        %v2219 = vpack.c.b16 %v2202, %v2201
        %v2220 = vpack.c.b16 %v2204, %v2203
        %2237 = vmatpush.bf16.msra.mxu0 %v2212
        %2238 = vmatpush.bf16.msra.mxu0 %v2211
        %2239 = vmatpush.bf16.msra.mxu0 %v2210
        %2240 = vmatpush.bf16.msra.mxu0 %v2209
        %2241 = vmatpush.bf16.msra.mxu0 %v2208
        %2242 = vmatpush.bf16.msra.mxu0 %v2207
        %2243 = vmatpush.bf16.msra.mxu0 %v2206
        %2244 = vmatpush.bf16.msra.mxu0 %v2205
        %2245 = vmatmul.bf16.gmra.mxu0 %v2101
        %v2246 = vpop.f32.mrf.mxu0
        %v2247 = vadd.f32 %v2139, %v2246
        %v2248 = vpop.f32.mrf.mxu0
        %v2249 = vadd.f32 %v2139, %v2248
        %2250 = vmatmul.bf16.gmra.mxu0 %v2103
        %v2251 = vpop.f32.mrf.mxu0
        %v2252 = vadd.f32 %v2139, %v2251
        %v2253 = vpop.f32.mrf.mxu0
        %v2254 = vadd.f32 %v2139, %v2253
        %2255 = vdwg.mxu0
        %2256 = vmatpush.bf16.msra.mxu0 %v2220
        %2257 = vmatpush.bf16.msra.mxu0 %v2219
        %2258 = vmatpush.bf16.msra.mxu0 %v2218
        %2259 = vmatpush.bf16.msra.mxu0 %v2217
        %2260 = vmatpush.bf16.msra.mxu0 %v2216
        %2261 = vmatpush.bf16.msra.mxu0 %v2215
        %2262 = vmatpush.bf16.msra.mxu0 %v2214
        %2263 = vmatpush.bf16.msra.mxu0 %v2213
        %2264 = vmatmul.bf16.gmra.mxu0 %v2102
        %v2265 = vpop.f32.mrf.mxu0
        %v2266 = vadd.f32 %v2247, %v2265
        %v2267 = vpop.f32.mrf.mxu0
        %v2268 = vadd.f32 %v2249, %v2267
        %2269 = vmatmul.bf16.gmra.mxu0 %v2104
        %v2270 = vpop.f32.mrf.mxu0
        %v2271 = vadd.f32 %v2252, %v2270
        %v2272 = vpop.f32.mrf.mxu0
        %v2273 = vadd.f32 %v2254, %v2272
        %2274 = vdwg.mxu0
        %v2275 = vadd.f32 %v2266, %v1883
        %v2276 = vadd.f32 %v2268, %v1884
        %v2277 = vadd.f32 %v2271, %v1885
        %v2278 = vadd.f32 %v2273, %v1886
        %v2279 = vld [vmem:[%s703] sm:$0x1]
        %v2280 = vld [vmem:[%s706] sm:$0x1]
        %2281 = vadd.xlane.f32.xlu0 %v2275
        %v2282 = vpop.xlane.xlu0 %2281
        %2283 = vadd.xlane.f32.xlu0 %v2276
        %v2284 = vpop.xlane.xlu0 %2283
        %2285 = vadd.xlane.f32.xlu0 %v2277
        %v2286 = vpop.xlane.xlu0 %2285
        %2287 = vadd.xlane.f32.xlu0 %v2278
        %v2288 = vpop.xlane.xlu0 %2287
        %v2289 = vmul.f32 %v2282, %v1800
        %v2290 = vmul.f32 %v2284, %v1800
        %v2291 = vmul.f32 %v2286, %v1800
        %v2292 = vmul.f32 %v2288, %v1800
        %v2293 = vsub.f32 %v2275, %v2289
        %v2294 = vsub.f32 %v2276, %v2290
        %v2295 = vsub.f32 %v2277, %v2291
        %v2296 = vsub.f32 %v2278, %v2292
        %v2297 = vmul.f32 %v2293, %v2293
        %v2298 = vmul.f32 %v2294, %v2294
        %v2299 = vmul.f32 %v2295, %v2295
        %v2300 = vmul.f32 %v2296, %v2296
        %2301 = vadd.xlane.f32.xlu0 %v2297
        %v2302 = vpop.xlane.xlu0 %2301
        %2303 = vadd.xlane.f32.xlu0 %v2298
        %v2304 = vpop.xlane.xlu0 %2303
        %2305 = vadd.xlane.f32.xlu0 %v2299
        %v2306 = vpop.xlane.xlu0 %2305
        %2307 = vadd.xlane.f32.xlu0 %v2300
        %v2308 = vpop.xlane.xlu0 %2307
        %v2309 = vmul.f32 %v2302, %v1800
        %v2310 = vmul.f32 %v2304, %v1800
        %v2311 = vmul.f32 %v2306, %v1800
        %v2312 = vmul.f32 %v2308, %v1800
        %v2313 = vadd.f32 %v2309, 1e-12
        %v2314 = vadd.f32 %v2310, 1e-12
        %v2315 = vadd.f32 %v2311, 1e-12
        %v2316 = vadd.f32 %v2312, 1e-12
        %v2317 = vrsqrt.pop %v2313
        %v2318 = vmul.f32 %v2317, %v2313
        %v2319 = vmul.f32 %v2318, %v2317
        %v2320 = vmul.f32 0.5, %v2319
        %v2321 = vsub.f32 1.5, %v2320
        %v2322 = vmul.f32 %v2317, %v2321
        %vm2323 = vweird.f32 %v2313
        %vm2324 = vweird.f32 %v2317
        %vm2325 = vmor %vm2323, %vm2324
        %v2326 = vsel %vm2325, %v2317, %v2322
        %v2327 = vrsqrt.pop %v2314
        %v2328 = vmul.f32 %v2327, %v2314
        %v2329 = vmul.f32 %v2328, %v2327
        %v2330 = vmul.f32 0.5, %v2329
        %v2331 = vsub.f32 1.5, %v2330
        %v2332 = vmul.f32 %v2327, %v2331
        %vm2333 = vweird.f32 %v2314
        %vm2334 = vweird.f32 %v2327
        %vm2335 = vmor %vm2333, %vm2334
        %v2336 = vsel %vm2335, %v2327, %v2332
        %v2337 = vrsqrt.pop %v2315
        %v2338 = vmul.f32 %v2337, %v2315
        %v2339 = vmul.f32 %v2338, %v2337
        %v2340 = vmul.f32 0.5, %v2339
        %v2341 = vsub.f32 1.5, %v2340
        %v2342 = vmul.f32 %v2337, %v2341
        %vm2343 = vweird.f32 %v2315
        %vm2344 = vweird.f32 %v2337
        %vm2345 = vmor %vm2343, %vm2344
        %v2346 = vsel %vm2345, %v2337, %v2342
        %v2347 = vrsqrt.pop %v2316
        %v2348 = vmul.f32 %v2347, %v2316
        %v2349 = vmul.f32 %v2348, %v2347
        %v2350 = vmul.f32 0.5, %v2349
        %v2351 = vsub.f32 1.5, %v2350
        %v2352 = vmul.f32 %v2347, %v2351
        %vm2353 = vweird.f32 %v2316
        %vm2354 = vweird.f32 %v2347
        %vm2355 = vmor %vm2353, %vm2354
        %v2356 = vsel %vm2355, %v2347, %v2352
        %v2357 = vmul.f32 %v2293, %v2326
        %v2358 = vmul.f32 %v2294, %v2336
        %v2359 = vmul.f32 %v2295, %v2346
        %v2360 = vmul.f32 %v2296, %v2356
        %v2362 = vperm.slane %v2279, 0
        %v2364 = vmul.f32 %v2357, %v2362
        %v2365 = vmul.f32 %v2358, %v2362
        %v2366 = vmul.f32 %v2359, %v2362
        %v2367 = vmul.f32 %v2360, %v2362
        %v2369 = vperm.slane %v2280, 0
        %v2371 = vadd.f32 %v2364, %v2369
        %v2372 = vadd.f32 %v2365, %v2369
        %v2373 = vadd.f32 %v2366, %v2369
        %v2374 = vadd.f32 %v2367, %v2369
        %2375 = vst [vmem:[%s16] sm:$0xff] %v2371
        %2376 = vst [vmem:[%s16 + $0x8] sm:$0xff] %v2372
        %2377 = vst [vmem:[%s16 + $0x10] sm:$0xff] %v2373
        %2378 = vst [vmem:[%s16 + $0x18] sm:$0xff] %v2374
        // Predicated region
        $region93: #{mrc_forward.1} parent=83 // pred_check
          %p2379 = pneg %p439
        $region94: #{mrc_forward.1} parent=83 // pred_check_branch
          %2381 = sbr.rel (%p2379) target = $region96
        $region95: #{mrc_forward.1} parent=83 // pred_region
          _
        $region96: #{mrc_forward.1} parent=83 // pred_fallthru
          _
        // Predicated region
        $region97: #{mrc_forward.1} parent=83 // pred_check
          %p2382 = pneg %p439
        $region98: #{mrc_forward.1} parent=83 // pred_check_branch
          %2384 = sbr.rel (%p2382) target = $region100
        $region99: #{mrc_forward.1} parent=83 // pred_region
          _
        $region100: #{mrc_forward.1} parent=83 // pred_fallthru
          _
      $region84: #{mrc_forward.1} parent=5 // pred_fallthru
        _
      %p2385 = scmp.le.s32.totalorder 2, %s25
      // Predicated region
      $region101: #{mrc_forward.1} parent=5 // pred_check
        %p2386 = pneg %p2385
      $region102: #{mrc_forward.1} parent=5 // pred_check_branch
        %2388 = sbr.rel (%p2386) target = $region104
      $region103: #{mrc_forward.1} parent=5 // pred_region
        %s2389 = ssub.s32 %s25, 2
      $region104: #{mrc_forward.1} parent=5 // pred_fallthru
        _
    $region6: #{mrc_forward.1} parent=1 // loop_footer
      %s29 = sadd.s32 1, %s25
    $region7: #{mrc_forward.1} parent=1 // loop_footer_branch
      %24 = sbr.rel target = $region3
    $region8: #{mrc_forward.1} parent=1 // loop_exit
      _
    %2390 = vsyncpa [#allocation3], 1
    %s2391 = scalar_lea.sflag [#allocation3], 1
    %2392 = vsyncpa %s2391, 1

</llo_original>
